<compile_context>
chip_gen: v6e
topology: v6e:2x2x1
jax: 0.10.0
libtpu: 0.0.40
codegen_flags: <defaults>
</compile_context>

<pallas_src>
import functools

import numpy as np
import jax
import jax.numpy as jnp
from jax import lax
from jax.experimental import pallas as pl
from jax.experimental.pallas import tpu as pltpu

# ----------------------------- config (small) -------------------------------
BATCH = 2
SEQ = 28              # must be > 20: query = tokens[:20], doc = tokens[20:]
Q_LEN = 20
BERT_HIDDEN = 32      # bert.config.hidden_size
NUM_LAYERS = 2        # bert.config.num_hidden_layers
VOCAB = 50
N_BINS = 11
DRMM_HIDDEN = 5


# ------------------------------ Pallas kernel -------------------------------
def _drmm_kernel(q_ref, d_ref, w_ref, aux_ref, out_ref, *, n_bins, batch):
    """Whole DRMM head in one gridless invocation.

    q_ref   : (N*Q, H) bf16   pre-normalized query token vectors,
                              rows ordered (layer, batch, token)
    d_ref   : (N*D, H) bf16   pre-normalized doc token vectors, same ordering
    w_ref   : (N*Q, n_bins+1 + B + 1) f32
              [:, :n_bins+1]            telescoped per-row weights on the
                                        cumulative counts c_i = #{sim >= b_i}
              [:, n_bins+1:n_bins+1+B]  per-row batch one-hot (final grouping)
              [:, -1:]                  per-row (layer,batch) block id
    aux_ref : (1, B + N*D) f32  [per-batch bias (cls term + biases) | per-column
                                 (layer,batch) block id]
    out_ref : (1, B) f32  ranking scores, written once
    """
    nbp1 = n_bins + 1

    # --- one flattened MXU matmul (contract the shared H axis of both) ------
    # bf16 inputs, f32 accumulation; pre-normalized rows => cosine similarity.
    sim = lax.dot_general(q_ref[...], d_ref[...],
                          dimension_numbers=(((1,), (1,)), ((), ())),
                          preferred_element_type=jnp.float32)      # (N*Q, N*D)
    nq, nd = sim.shape

    w_all = w_ref[...]                                   # (N*Q, nbp1+B+1)
    aux = aux_ref[...]                                   # (1, B+N*D)
    w_bins = w_all[:, :nbp1]                             # (N*Q, n_bins+1)
    sel = w_all[:, nbp1:nbp1 + batch]                    # (N*Q, B) batch one-hot
    row_grp = w_all[:, nbp1 + batch:]                    # (N*Q, 1) block id
    bias = aux[:, :batch]                                # (1, B)
    col_grp = aux[:, batch:]                             # (1, N*D) block id

    # neutralize cross-(layer,batch) blocks: any value below bounds[0] = -1
    # contributes 0 to every cumulative count.
    sim = jnp.where(row_grp == col_grp, sim, -2.0)       # (N*Q, N*D)

    # --- fused histogram pooling + histogram/combine linears ----------------
    # acc[r, c] = sum_i [sim[r,c] >= bounds[i]] * w_bins[r, i]
    # Lane-dense weighted-mask accumulation; no per-bin reductions.
    bounds = np.linspace(-1.0, 1.0, nbp1).astype(np.float32)
    acc = jnp.zeros((nq, nd), jnp.float32)
    for i in range(nbp1):
        acc = acc + jnp.where(sim >= bounds[i], w_bins[:, i:i + 1], 0.0)

    # single lane reduce, then one batch-grouped sublane reduce
    row_sums = jnp.sum(acc, axis=1, keepdims=True)            # (N*Q, 1)
    hist = jnp.sum(row_sums * sel, axis=0, keepdims=True)     # (1, B)

    out_ref[...] = hist + bias                                 # single store


def drmm_score(layers, cls_out, hist_w, hist_b, comb_w, comb_b,
               *, n_bins, q_len):
    """layers: (L_all, B, S, H); returns (B, 1) ranking score."""
    l_all, b, s, h = layers.shape
    hidden = hist_w.shape[0]
    d_len = s - q_len
    n = l_all * b
    nbp1 = n_bins + 1

    # ---- wrapper-side layout plumbing & exact weight fusion (plain JAX) ----
    # 1) split query/doc, flatten (layer, batch, token) -> rows, pre-normalize
    #    each row so the kernel matmul is cosine similarity, cast to bf16.
    q = layers[:, :, :q_len, :].reshape(n * q_len, h)          # (N*Q, H)
    d = layers[:, :, q_len:, :].reshape(n * d_len, h)          # (N*D, H)
    # TODO(synk): the reference clamps the norm *product* at 1e-8; per-vector
    # clamping only differs for ~zero-norm token embeddings (not exercised).
    q = q / jnp.maximum(jnp.sqrt(jnp.sum(q * q, axis=-1, keepdims=True)), 1e-8)
    d = d / jnp.maximum(jnp.sqrt(jnp.sum(d * d, axis=-1, keepdims=True)), 1e-8)
    q = q.astype(jnp.bfloat16)
    d = d.astype(jnp.bfloat16)

    # 2) exact fusion of the `histogram` Linear with the per-layer `combine`
    #    slices, telescoped onto cumulative counts c_i = #{sim >= bounds[i]}.
    w_cls = comb_w[:, :h]                                      # (1, H)
    w_hist_l = comb_w[:, h:].reshape(l_all, hidden)            # (L, hidden)
    v = (w_hist_l @ hist_w) / float(q_len * d_len)             # (L, n_bins)
    zcol = jnp.zeros((l_all, 1), jnp.float32)
    w_cum = (jnp.concatenate([v, zcol], axis=1)
             - jnp.concatenate([zcol, v], axis=1))             # (L, n_bins+1)

    # 3) per-row metadata packed into the same weight slab (no extra DMAs):
    #    [telescoped weights | batch one-hot | (layer,batch) block id]
    n_idx = jnp.arange(n)                                      # n = l*B + b
    w_rows = jnp.repeat(w_cum, b * q_len, axis=0)              # (N*Q, n_bins+1)
    batch_onehot = jnp.repeat(
        jax.nn.one_hot(n_idx % b, b, dtype=jnp.float32), q_len, axis=0)  # (N*Q, B)
    row_grp = jnp.repeat(n_idx.astype(jnp.float32)[:, None], q_len, axis=0)
    w_aug = jnp.concatenate([w_rows, batch_onehot, row_grp],
                            axis=1).astype(jnp.float32)        # (N*Q, nbp1+B+1)

    # 4) cls contribution + both biases folded into one (1, B) vector, and the
    #    per-column block ids appended (single tiny aux input).
    const = comb_b.reshape(()) + jnp.sum(w_hist_l * hist_b[None, :])
    bias_vec = (cls_out @ w_cls.T).reshape(1, b) + const       # (1, B)
    col_grp = jnp.repeat(n_idx.astype(jnp.float32), d_len)[None, :]   # (1, N*D)
    aux = jnp.concatenate([bias_vec, col_grp], axis=1).astype(jnp.float32)

    kernel = functools.partial(_drmm_kernel, n_bins=n_bins, batch=b)
    out = pl.pallas_call(
        kernel,
        out_shape=jax.ShapeDtypeStruct((1, b), jnp.float32),
        in_specs=[
            pl.BlockSpec(memory_space=pltpu.MemorySpace.VMEM),  # q  (N*Q, H) bf16
            pl.BlockSpec(memory_space=pltpu.MemorySpace.VMEM),  # d  (N*D, H) bf16
            pl.BlockSpec(memory_space=pltpu.MemorySpace.VMEM),  # w_aug
            pl.BlockSpec(memory_space=pltpu.MemorySpace.VMEM),  # aux (bias | col ids)
        ],
        out_specs=pl.BlockSpec(memory_space=pltpu.MemorySpace.VMEM),
    )(q, d, w_aug, aux)
    return out.reshape(b, 1)


# ---------------------------- plain-JAX glue ---------------------------------
def init_params(key):
    ks = jax.random.split(key, 9)
    s = 0.1
    params = {
        'word_emb': jax.random.normal(ks[0], (VOCAB, BERT_HIDDEN), jnp.float32) * s,
        'pos_emb':  jax.random.normal(ks[1], (SEQ, BERT_HIDDEN), jnp.float32) * s,
        'type_emb': jax.random.normal(ks[2], (2, BERT_HIDDEN), jnp.float32) * s,
        'layer_w':  jax.random.normal(ks[3], (NUM_LAYERS, BERT_HIDDEN, BERT_HIDDEN), jnp.float32) * s,
        'layer_b':  jax.random.normal(ks[4], (NUM_LAYERS, BERT_HIDDEN), jnp.float32) * s,
        'hist_w':   jax.random.normal(ks[5], (DRMM_HIDDEN, N_BINS), jnp.float32) * s,
        'hist_b':   jax.random.normal(ks[6], (DRMM_HIDDEN,), jnp.float32) * s,
    }
    n_all_layers = NUM_LAYERS + 2  # [hidden_states[0]] + hidden_states (= L+1 entries)
    # TODO(synk): original module sizes `combine` with hidden_size*(num_hidden_layers+1),
    # but its forward concatenates num_hidden_layers+2 histogram features; sized to match forward.
    in_feat = BERT_HIDDEN + DRMM_HIDDEN * n_all_layers
    params['comb_w'] = jax.random.normal(ks[7], (1, in_feat), jnp.float32) * s
    params['comb_b'] = jax.random.normal(ks[8], (1,), jnp.float32) * s
    return params


def mbert_stub(params, input_ids, attention_mask, token_type_ids):
    # TODO(synk): pretrained BERT encoder not reproduced; deterministic synthetic stand-in
    # emitting (num_hidden_layers + 1) hidden states of shape (B, S, H).
    emb = (params['word_emb'][input_ids]
           + params['pos_emb'][None, :input_ids.shape[1], :]
           + params['type_emb'][token_type_ids])
    h = emb * attention_mask[..., None].astype(emb.dtype)
    hidden_states = [h]
    for i in range(NUM_LAYERS):
        h = jnp.tanh(h @ params['layer_w'][i] + params['layer_b'][i])
        hidden_states.append(h)
    return hidden_states


def cedr_drmm_forward(params, input_ids, attention_mask, token_type_ids):
    hidden_states = mbert_stub(params, input_ids, attention_mask, token_type_ids)
    cls_output = hidden_states[-1][:, 0, :]                       # (B, H)
    all_layers = [hidden_states[0]] + list(hidden_states)         # L_all = NUM_LAYERS + 2
    layers = jnp.stack(all_layers, axis=0)                        # (L_all, B, S, H)
    return drmm_score(layers, cls_output,
                      params['hist_w'], params['hist_b'],
                      params['comb_w'], params['comb_b'],
                      n_bins=N_BINS, q_len=Q_LEN)


def reference_forward(params, input_ids, attention_mask, token_type_ids):
    """Plain-JAX mirror of the PyTorch forward (for verification)."""
    hidden_states = mbert_stub(params, input_ids, attention_mask, token_type_ids)
    cls_output = hidden_states[-1][:, 0, :]
    all_layers = [hidden_states[0]] + list(hidden_states)
    bounds = np.linspace(-1.0, 1.0, N_BINS + 1).astype(np.float32)
    feats = []
    for x in all_layers:
        q = x[:, :Q_LEN, :]
        d = x[:, Q_LEN:, :]
        dots = jnp.einsum('bqh,bdh->bqd', q, d)
        qn = jnp.sqrt(jnp.sum(q * q, axis=-1))
        dn = jnp.sqrt(jnp.sum(d * d, axis=-1))
        sim = dots / jnp.maximum(qn[:, :, None] * dn[:, None, :], 1e-8)
        cols = [jnp.sum(((sim >= bounds[i]) & (sim < bounds[i + 1])).astype(jnp.float32),
                        axis=(1, 2)) for i in range(N_BINS)]
        hist = jnp.stack(cols, axis=-1) / float(sim.shape[1] * sim.shape[2])
        feats.append(hist @ params['hist_w'].T + params['hist_b'])
    hf = jnp.concatenate(feats, axis=-1)
    comb = jnp.concatenate([cls_output, hf], axis=-1)
    return comb @ params['comb_w'].T + params['comb_b']


# --------------------------------- main --------------------------------------
if __name__ == "__main__":
    key = jax.random.PRNGKey(0)
    kp, ki = jax.random.split(key)
    params = init_params(kp)

    input_ids = jax.random.randint(ki, (BATCH, SEQ), 0, VOCAB, dtype=jnp.int32)
    attention_mask = jnp.ones((BATCH, SEQ), jnp.int32)
    token_type_ids = jnp.concatenate(
        [jnp.zeros((BATCH, Q_LEN), jnp.int32),
         jnp.ones((BATCH, SEQ - Q_LEN), jnp.int32)], axis=1)

    out = cedr_drmm_forward(params, input_ids, attention_mask, token_type_ids)
    out = jax.block_until_ready(out)

    ref = jax.block_until_ready(
        reference_forward(params, input_ids, attention_mask, token_type_ids))

    assert out.shape == (BATCH, 1), out.shape
    assert bool(jnp.all(jnp.isfinite(out)))
    # bf16 matmul inputs can flip counts near bin boundaries (~3e-4 each);
    # well inside this tolerance.
    if not jnp.allclose(out, ref, rtol=1e-3, atol=5e-3):
        raise AssertionError(f"kernel/reference mismatch: {out} vs {ref}")

    print("KERNEL_OK")
</pallas_src>

<mosaic_0001>
module attributes {stable_mosaic.version = 11 : i64} {
  func.func @_drmm_kernel(%arg0: memref<160x32xbf16, #tpu.memory_space<vmem>>, %arg1: memref<64x32xbf16, #tpu.memory_space<vmem>>, %arg2: memref<160x15xf32, #tpu.memory_space<vmem>>, %arg3: memref<1x66xf32, #tpu.memory_space<vmem>>, %arg4: memref<1x2xf32, #tpu.memory_space<vmem>>) attributes {dimension_semantics = [], scalar_prefetch = 0 : i64, scratch_operands = 0 : i64, tpu.core_type = #tpu.core_type<tc>} {
    %c0 = arith.constant 0 : index
    %c0_0 = arith.constant 0 : index
    %0 = vector.load %arg0[%c0, %c0_0] : memref<160x32xbf16, #tpu.memory_space<vmem>>, vector<160x32xbf16>
    %c0_1 = arith.constant 0 : index
    %c0_2 = arith.constant 0 : index
    %1 = vector.load %arg1[%c0_1, %c0_2] : memref<64x32xbf16, #tpu.memory_space<vmem>>, vector<64x32xbf16>
    %cst = arith.constant dense<0.000000e+00> : vector<160x64xf32>
    %2 = tpu.matmul %0, %1, %cst {dimension_numbers = #tpu.dot_dimension_numbers<[1], [1], [0], [0], [0, 0, 1, 0], [], []>} : vector<160x32xbf16>, vector<64x32xbf16>, vector<160x64xf32> -> vector<160x64xf32>
    %c0_3 = arith.constant 0 : index
    %c0_4 = arith.constant 0 : index
    %3 = vector.load %arg2[%c0_3, %c0_4] : memref<160x15xf32, #tpu.memory_space<vmem>>, vector<160x15xf32>
    %c0_5 = arith.constant 0 : index
    %c0_6 = arith.constant 0 : index
    %4 = vector.load %arg3[%c0_5, %c0_6] : memref<1x66xf32, #tpu.memory_space<vmem>>, vector<1x66xf32>
    %5 = vector.extract_strided_slice %3 {offsets = [0, 0], sizes = [160, 12], strides = [1, 1]} : vector<160x15xf32> to vector<160x12xf32>
    %6 = vector.extract_strided_slice %3 {offsets = [0, 12], sizes = [160, 2], strides = [1, 1]} : vector<160x15xf32> to vector<160x2xf32>
    %7 = vector.extract_strided_slice %3 {offsets = [0, 14], sizes = [160, 1], strides = [1, 1]} : vector<160x15xf32> to vector<160x1xf32>
    %8 = vector.extract_strided_slice %4 {offsets = [0, 0], sizes = [1, 2], strides = [1, 1]} : vector<1x66xf32> to vector<1x2xf32>
    %9 = vector.extract_strided_slice %4 {offsets = [0, 2], sizes = [1, 64], strides = [1, 1]} : vector<1x66xf32> to vector<1x64xf32>
    %10 = vector.broadcast %7 : vector<160x1xf32> to vector<160x64xf32>
    %11 = vector.broadcast %9 : vector<1x64xf32> to vector<160x64xf32>
    %12 = arith.cmpf oeq, %10, %11 : vector<160x64xf32>
    %cst_7 = arith.constant -2.000000e+00 : f32
    %13 = vector.broadcast %cst_7 : f32 to vector<160x64xf32>
    %14 = arith.select %12, %2, %13 : vector<160x64xi1>, vector<160x64xf32>
    %cst_8 = arith.constant 0.000000e+00 : f32
    %15 = vector.broadcast %cst_8 : f32 to vector<160x64xf32>
    %cst_9 = arith.constant -1.000000e+00 : f32
    %16 = vector.broadcast %cst_9 : f32 to vector<160x64xf32>
    %17 = arith.cmpf oge, %14, %16 : vector<160x64xf32>
    %18 = vector.extract_strided_slice %5 {offsets = [0, 0], sizes = [160, 1], strides = [1, 1]} : vector<160x12xf32> to vector<160x1xf32>
    %cst_10 = arith.constant 0.000000e+00 : f32
    %19 = vector.shape_cast %18 : vector<160x1xf32> to vector<160x1xf32>
    %20 = vector.broadcast %19 : vector<160x1xf32> to vector<160x64xf32>
    %21 = vector.broadcast %cst_10 : f32 to vector<160x64xf32>
    %22 = arith.select %17, %20, %21 : vector<160x64xi1>, vector<160x64xf32>
    %23 = arith.addf %15, %22 : vector<160x64xf32>
    %cst_11 = arith.constant -0.818181812 : f32
    %24 = vector.broadcast %cst_11 : f32 to vector<160x64xf32>
    %25 = arith.cmpf oge, %14, %24 : vector<160x64xf32>
    %26 = vector.extract_strided_slice %5 {offsets = [0, 1], sizes = [160, 1], strides = [1, 1]} : vector<160x12xf32> to vector<160x1xf32>
    %cst_12 = arith.constant 0.000000e+00 : f32
    %27 = vector.shape_cast %26 : vector<160x1xf32> to vector<160x1xf32>
    %28 = vector.broadcast %27 : vector<160x1xf32> to vector<160x64xf32>
    %29 = vector.broadcast %cst_12 : f32 to vector<160x64xf32>
    %30 = arith.select %25, %28, %29 : vector<160x64xi1>, vector<160x64xf32>
    %31 = arith.addf %23, %30 : vector<160x64xf32>
    %cst_13 = arith.constant -0.636363626 : f32
    %32 = vector.broadcast %cst_13 : f32 to vector<160x64xf32>
    %33 = arith.cmpf oge, %14, %32 : vector<160x64xf32>
    %34 = vector.extract_strided_slice %5 {offsets = [0, 2], sizes = [160, 1], strides = [1, 1]} : vector<160x12xf32> to vector<160x1xf32>
    %cst_14 = arith.constant 0.000000e+00 : f32
    %35 = vector.shape_cast %34 : vector<160x1xf32> to vector<160x1xf32>
    %36 = vector.broadcast %35 : vector<160x1xf32> to vector<160x64xf32>
    %37 = vector.broadcast %cst_14 : f32 to vector<160x64xf32>
    %38 = arith.select %33, %36, %37 : vector<160x64xi1>, vector<160x64xf32>
    %39 = arith.addf %31, %38 : vector<160x64xf32>
    %cst_15 = arith.constant -0.454545468 : f32
    %40 = vector.broadcast %cst_15 : f32 to vector<160x64xf32>
    %41 = arith.cmpf oge, %14, %40 : vector<160x64xf32>
    %42 = vector.extract_strided_slice %5 {offsets = [0, 3], sizes = [160, 1], strides = [1, 1]} : vector<160x12xf32> to vector<160x1xf32>
    %cst_16 = arith.constant 0.000000e+00 : f32
    %43 = vector.shape_cast %42 : vector<160x1xf32> to vector<160x1xf32>
    %44 = vector.broadcast %43 : vector<160x1xf32> to vector<160x64xf32>
    %45 = vector.broadcast %cst_16 : f32 to vector<160x64xf32>
    %46 = arith.select %41, %44, %45 : vector<160x64xi1>, vector<160x64xf32>
    %47 = arith.addf %39, %46 : vector<160x64xf32>
    %cst_17 = arith.constant -0.272727281 : f32
    %48 = vector.broadcast %cst_17 : f32 to vector<160x64xf32>
    %49 = arith.cmpf oge, %14, %48 : vector<160x64xf32>
    %50 = vector.extract_strided_slice %5 {offsets = [0, 4], sizes = [160, 1], strides = [1, 1]} : vector<160x12xf32> to vector<160x1xf32>
    %cst_18 = arith.constant 0.000000e+00 : f32
    %51 = vector.shape_cast %50 : vector<160x1xf32> to vector<160x1xf32>
    %52 = vector.broadcast %51 : vector<160x1xf32> to vector<160x64xf32>
    %53 = vector.broadcast %cst_18 : f32 to vector<160x64xf32>
    %54 = arith.select %49, %52, %53 : vector<160x64xi1>, vector<160x64xf32>
    %55 = arith.addf %47, %54 : vector<160x64xf32>
    %cst_19 = arith.constant -0.0909090936 : f32
    %56 = vector.broadcast %cst_19 : f32 to vector<160x64xf32>
    %57 = arith.cmpf oge, %14, %56 : vector<160x64xf32>
    %58 = vector.extract_strided_slice %5 {offsets = [0, 5], sizes = [160, 1], strides = [1, 1]} : vector<160x12xf32> to vector<160x1xf32>
    %cst_20 = arith.constant 0.000000e+00 : f32
    %59 = vector.shape_cast %58 : vector<160x1xf32> to vector<160x1xf32>
    %60 = vector.broadcast %59 : vector<160x1xf32> to vector<160x64xf32>
    %61 = vector.broadcast %cst_20 : f32 to vector<160x64xf32>
    %62 = arith.select %57, %60, %61 : vector<160x64xi1>, vector<160x64xf32>
    %63 = arith.addf %55, %62 : vector<160x64xf32>
    %cst_21 = arith.constant 0.0909090936 : f32
    %64 = vector.broadcast %cst_21 : f32 to vector<160x64xf32>
    %65 = arith.cmpf oge, %14, %64 : vector<160x64xf32>
    %66 = vector.extract_strided_slice %5 {offsets = [0, 6], sizes = [160, 1], strides = [1, 1]} : vector<160x12xf32> to vector<160x1xf32>
    %cst_22 = arith.constant 0.000000e+00 : f32
    %67 = vector.shape_cast %66 : vector<160x1xf32> to vector<160x1xf32>
    %68 = vector.broadcast %67 : vector<160x1xf32> to vector<160x64xf32>
    %69 = vector.broadcast %cst_22 : f32 to vector<160x64xf32>
    %70 = arith.select %65, %68, %69 : vector<160x64xi1>, vector<160x64xf32>
    %71 = arith.addf %63, %70 : vector<160x64xf32>
    %cst_23 = arith.constant 0.272727281 : f32
    %72 = vector.broadcast %cst_23 : f32 to vector<160x64xf32>
    %73 = arith.cmpf oge, %14, %72 : vector<160x64xf32>
    %74 = vector.extract_strided_slice %5 {offsets = [0, 7], sizes = [160, 1], strides = [1, 1]} : vector<160x12xf32> to vector<160x1xf32>
    %cst_24 = arith.constant 0.000000e+00 : f32
    %75 = vector.shape_cast %74 : vector<160x1xf32> to vector<160x1xf32>
    %76 = vector.broadcast %75 : vector<160x1xf32> to vector<160x64xf32>
    %77 = vector.broadcast %cst_24 : f32 to vector<160x64xf32>
    %78 = arith.select %73, %76, %77 : vector<160x64xi1>, vector<160x64xf32>
    %79 = arith.addf %71, %78 : vector<160x64xf32>
    %cst_25 = arith.constant 0.454545468 : f32
    %80 = vector.broadcast %cst_25 : f32 to vector<160x64xf32>
    %81 = arith.cmpf oge, %14, %80 : vector<160x64xf32>
    %82 = vector.extract_strided_slice %5 {offsets = [0, 8], sizes = [160, 1], strides = [1, 1]} : vector<160x12xf32> to vector<160x1xf32>
    %cst_26 = arith.constant 0.000000e+00 : f32
    %83 = vector.shape_cast %82 : vector<160x1xf32> to vector<160x1xf32>
    %84 = vector.broadcast %83 : vector<160x1xf32> to vector<160x64xf32>
    %85 = vector.broadcast %cst_26 : f32 to vector<160x64xf32>
    %86 = arith.select %81, %84, %85 : vector<160x64xi1>, vector<160x64xf32>
    %87 = arith.addf %79, %86 : vector<160x64xf32>
    %cst_27 = arith.constant 0.636363626 : f32
    %88 = vector.broadcast %cst_27 : f32 to vector<160x64xf32>
    %89 = arith.cmpf oge, %14, %88 : vector<160x64xf32>
    %90 = vector.extract_strided_slice %5 {offsets = [0, 9], sizes = [160, 1], strides = [1, 1]} : vector<160x12xf32> to vector<160x1xf32>
    %cst_28 = arith.constant 0.000000e+00 : f32
    %91 = vector.shape_cast %90 : vector<160x1xf32> to vector<160x1xf32>
    %92 = vector.broadcast %91 : vector<160x1xf32> to vector<160x64xf32>
    %93 = vector.broadcast %cst_28 : f32 to vector<160x64xf32>
    %94 = arith.select %89, %92, %93 : vector<160x64xi1>, vector<160x64xf32>
    %95 = arith.addf %87, %94 : vector<160x64xf32>
    %cst_29 = arith.constant 0.818181812 : f32
    %96 = vector.broadcast %cst_29 : f32 to vector<160x64xf32>
    %97 = arith.cmpf oge, %14, %96 : vector<160x64xf32>
    %98 = vector.extract_strided_slice %5 {offsets = [0, 10], sizes = [160, 1], strides = [1, 1]} : vector<160x12xf32> to vector<160x1xf32>
    %cst_30 = arith.constant 0.000000e+00 : f32
    %99 = vector.shape_cast %98 : vector<160x1xf32> to vector<160x1xf32>
    %100 = vector.broadcast %99 : vector<160x1xf32> to vector<160x64xf32>
    %101 = vector.broadcast %cst_30 : f32 to vector<160x64xf32>
    %102 = arith.select %97, %100, %101 : vector<160x64xi1>, vector<160x64xf32>
    %103 = arith.addf %95, %102 : vector<160x64xf32>
    %cst_31 = arith.constant 1.000000e+00 : f32
    %104 = vector.broadcast %cst_31 : f32 to vector<160x64xf32>
    %105 = arith.cmpf oge, %14, %104 : vector<160x64xf32>
    %106 = vector.extract_strided_slice %5 {offsets = [0, 11], sizes = [160, 1], strides = [1, 1]} : vector<160x12xf32> to vector<160x1xf32>
    %cst_32 = arith.constant 0.000000e+00 : f32
    %107 = vector.shape_cast %106 : vector<160x1xf32> to vector<160x1xf32>
    %108 = vector.broadcast %107 : vector<160x1xf32> to vector<160x64xf32>
    %109 = vector.broadcast %cst_32 : f32 to vector<160x64xf32>
    %110 = arith.select %105, %108, %109 : vector<160x64xi1>, vector<160x64xf32>
    %111 = arith.addf %103, %110 : vector<160x64xf32>
    %cst_33 = arith.constant dense<0.000000e+00> : vector<160xf32>
    %112 = vector.multi_reduction <add>, %111, %cst_33 [1] : vector<160x64xf32> to vector<160xf32>
    %113 = vector.shape_cast %112 : vector<160xf32> to vector<160x1xf32>
    %114 = vector.broadcast %113 : vector<160x1xf32> to vector<160x2xf32>
    %115 = arith.mulf %114, %6 : vector<160x2xf32>
    %cst_34 = arith.constant dense<0.000000e+00> : vector<2xf32>
    %116 = vector.multi_reduction <add>, %115, %cst_34 [0] : vector<160x2xf32> to vector<2xf32>
    %117 = vector.shape_cast %116 : vector<2xf32> to vector<1x2xf32>
    %118 = arith.addf %117, %8 : vector<1x2xf32>
    %c0_35 = arith.constant 0 : index
    %c0_36 = arith.constant 0 : index
    %119 = vector.load %arg4[%c0_35, %c0_36] : memref<1x2xf32, #tpu.memory_space<vmem>>, vector<1x2xf32>
    tpu.vector_store %arg4[%c0_35, %c0_36], %118 {strides = array<i32>} : memref<1x2xf32, #tpu.memory_space<vmem>>, vector<1x2xf32>,
    return
  }
}

</mosaic_0001>

<llo_original>
// kernel: tpu_custom_call.1
$region0: #{tpu_custom_call.1}
  #allocation0 [shape = 'u32[]', space=smem, size = 0x4, offset = 0x4, fixed_abs, tag = 'smem constant byte address 0x4 - core index']
  #allocation1 [shape = 'u32[144,128]{1,0:T(1,128)}', space=vmem, size = 0x12000, scoped, tag = 'internal scratch']
  %s0 = inlined_call_operand.vmem [shape: bf16[160,32], index: 0, kind: input, shape index: {}]
  %s1 = inlined_call_operand.vmem [shape: bf16[64,32], index: 1, kind: input, shape index: {}]
  %s2 = inlined_call_operand.vmem [shape: f32[160,15], index: 2, kind: input, shape index: {}]
  %s3 = inlined_call_operand.vmem [shape: f32[1,66], index: 3, kind: input, shape index: {}]
  %s4 = inlined_call_operand.hbm [shape: f32[1,2], index: 4, kind: output, shape index: {}]
  %s5 = sld [smem:[#allocation0]]
  $region26: #{tpu_custom_call.1} parent=0
    _
  %s7 = ssub.s32 1, %s5
  %s8 = scalar_select 0, %s7, %s5
  $region1: #{tpu_custom_call.1} parent=0
    #allocation2 [shape = 'u8[512]{0}', space=vmem, size = 0x400, scoped, tag = 'output window, operand 0, single buffered']
    #allocation3 [shape = 's32[1]{0}', space=sflag, size = 0x4, scoped, tag = 'scoped memory for tpu_custom_call.1']
    %9 = vsyncpa [#allocation3], 0
    // Predicated region
    $region2: #{tpu_custom_call.1} parent=1 // pred_check
      _
    $region3: #{tpu_custom_call.1} parent=1 // pred_check_branch
      %11 = sbr.rel (0) target = $region5
    $region4: #{tpu_custom_call.1} parent=1 // pred_region
      _
    $region5: #{tpu_custom_call.1} parent=1 // pred_fallthru
      _
    // Predicated region
    $region6: #{tpu_custom_call.1} parent=1 // pred_check
      _
    $region7: #{tpu_custom_call.1} parent=1 // pred_check_branch
      %13 = sbr.rel (0) target = $region9
    $region8: #{tpu_custom_call.1} parent=1 // pred_region
      _
    $region9: #{tpu_custom_call.1} parent=1 // pred_fallthru
      _
    // Predicated region
    $region10: #{tpu_custom_call.1} parent=1 // pred_check
      _
    $region11: #{tpu_custom_call.1} parent=1 // pred_check_branch
      %15 = sbr.rel (0) target = $region13
    $region12: #{tpu_custom_call.1} parent=1 // pred_region
      _
    $region13: #{tpu_custom_call.1} parent=1 // pred_fallthru
      _
    // Predicated region
    $region14: #{tpu_custom_call.1} parent=1 // pred_check
      _
    $region15: #{tpu_custom_call.1} parent=1 // pred_check_branch
      %17 = sbr.rel (0) target = $region17
    $region16: #{tpu_custom_call.1} parent=1 // pred_region
      _
    $region17: #{tpu_custom_call.1} parent=1 // pred_fallthru
      _
    %v19 = vld [vmem:[%s0] sm:$0xf]
    %v20 = vld [vmem:[%s0 + $0x4] sm:$0xf]
    %v21 = vld [vmem:[%s0 + $0x8] sm:$0xf]
    %v22 = vld [vmem:[%s0 + $0xc] sm:$0xf]
    %v23 = vld [vmem:[%s0 + $0x10] sm:$0xf]
    %v24 = vld [vmem:[%s0 + $0x14] sm:$0xf]
    %v25 = vld [vmem:[%s0 + $0x18] sm:$0xf]
    %v26 = vld [vmem:[%s0 + $0x1c] sm:$0xf]
    %v27 = vld [vmem:[%s0 + $0x20] sm:$0xf]
    %v28 = vld [vmem:[%s0 + $0x24] sm:$0xf]
    %v29 = vld [vmem:[%s0 + $0x28] sm:$0xf]
    %v30 = vld [vmem:[%s0 + $0x2c] sm:$0xf]
    %v31 = vld [vmem:[%s0 + $0x30] sm:$0xf]
    %v32 = vld [vmem:[%s0 + $0x34] sm:$0xf]
    %v33 = vld [vmem:[%s0 + $0x38] sm:$0xf]
    %v34 = vld [vmem:[%s0 + $0x3c] sm:$0xf]
    %v35 = vld [vmem:[%s0 + $0x40] sm:$0xf]
    %v36 = vld [vmem:[%s0 + $0x44] sm:$0xf]
    %v37 = vld [vmem:[%s0 + $0x48] sm:$0xf]
    %v38 = vld [vmem:[%s0 + $0x4c] sm:$0xf]
    %v39 = vld [vmem:[%s1] sm:$0xf]
    %v40 = vld [vmem:[%s1 + $0x4] sm:$0xf]
    %v41 = vld [vmem:[%s1 + $0x8] sm:$0xf]
    %v42 = vld [vmem:[%s1 + $0xc] sm:$0xf]
    %v43 = vld [vmem:[%s1 + $0x10] sm:$0xf]
    %v44 = vld [vmem:[%s1 + $0x14] sm:$0xf]
    %v45 = vld [vmem:[%s1 + $0x18] sm:$0xf]
    %v46 = vld [vmem:[%s1 + $0x1c] sm:$0xf]
    %v67 = vunpack.c.l.b16 %v19
    %v68 = vunpack.c.l.b16 %v20
    %v69 = vunpack.c.l.b16 %v21
    %v70 = vunpack.c.l.b16 %v22
    %v71 = vunpack.c.l.b16 %v23
    %v72 = vunpack.c.l.b16 %v24
    %v73 = vunpack.c.l.b16 %v25
    %v74 = vunpack.c.l.b16 %v26
    %v75 = vunpack.c.l.b16 %v27
    %v76 = vunpack.c.l.b16 %v28
    %v77 = vunpack.c.l.b16 %v29
    %v78 = vunpack.c.l.b16 %v30
    %v79 = vunpack.c.l.b16 %v31
    %v80 = vunpack.c.l.b16 %v32
    %v81 = vunpack.c.l.b16 %v33
    %v82 = vunpack.c.l.b16 %v34
    %v83 = vunpack.c.l.b16 %v35
    %v84 = vunpack.c.l.b16 %v36
    %v85 = vunpack.c.l.b16 %v37
    %v86 = vunpack.c.l.b16 %v38
    %v87 = vpack.c.b16 %v68, %v67
    %v88 = vpack.c.b16 %v70, %v69
    %v89 = vpack.c.b16 %v72, %v71
    %v90 = vpack.c.b16 %v74, %v73
    %v91 = vpack.c.b16 %v76, %v75
    %v92 = vpack.c.b16 %v78, %v77
    %v93 = vpack.c.b16 %v80, %v79
    %v94 = vpack.c.b16 %v82, %v81
    %v95 = vpack.c.b16 %v84, %v83
    %v96 = vpack.c.b16 %v86, %v85
    %v105 = vunpack.c.l.b16 %v39
    %v106 = vunpack.c.l.b16 %v40
    %v107 = vunpack.c.l.b16 %v41
    %v108 = vunpack.c.l.b16 %v42
    %v109 = vunpack.c.l.b16 %v43
    %v110 = vunpack.c.l.b16 %v44
    %v111 = vunpack.c.l.b16 %v45
    %v112 = vunpack.c.l.b16 %v46
    %v113 = vpack.c.b16 %v106, %v105
    %v114 = vpack.c.b16 %v108, %v107
    %v115 = vpack.c.b16 %v110, %v109
    %v116 = vpack.c.b16 %v112, %v111
    %vm117 = vcmask 261120
    %v119 = vsel %vm117, %v87, 0
    %v122 = vsel %vm117, %v88, 0
    %v125 = vsel %vm117, %v89, 0
    %v128 = vsel %vm117, %v90, 0
    %v131 = vsel %vm117, %v91, 0
    %v134 = vsel %vm117, %v92, 0
    %v137 = vsel %vm117, %v93, 0
    %v140 = vsel %vm117, %v94, 0
    %v143 = vsel %vm117, %v95, 0
    %v146 = vsel %vm117, %v96, 0
    %v149 = vsel %vm117, %v113, 0
    %v152 = vsel %vm117, %v114, 0
    %v155 = vsel %vm117, %v115, 0
    %v158 = vsel %vm117, %v116, 0
    %160 = vmatprep.subr.bf16.mxu0 0
    %161 = vmatpush1.bf16.xpose.msra.mxu0 0
    %162 = vmatprep.subr.bf16.mxu0 0
    %163 = vmatpush1.bf16.xpose.msra.mxu0 0
    %164 = vmatprep.subr.bf16.mxu0 0
    %165 = vmatpush1.bf16.xpose.msra.mxu0 0
    %166 = vmatprep.subr.bf16.mxu0 0
    %167 = vmatpush1.bf16.xpose.msra.mxu0 0
    %168 = vmatprep.subr.bf16.mxu0 0
    %169 = vmatpush1.bf16.xpose.msra.mxu0 %v158
    %170 = vmatprep.subr.bf16.mxu0 0
    %171 = vmatpush1.bf16.xpose.msra.mxu0 %v155
    %172 = vmatprep.subr.bf16.mxu0 0
    %173 = vmatpush1.bf16.xpose.msra.mxu0 %v152
    %174 = vmatprep.subr.bf16.mxu0 0
    %175 = vmatpush1.bf16.xpose.msra.mxu0 %v149
    %176 = vmatprep.subr.bf16.mxu0 0
    %177 = vmatpush2.bf16.xpose.msra.mxu0 0
    %178 = vmatprep.subr.bf16.mxu0 0
    %179 = vmatpush2.bf16.xpose.msra.mxu0 0
    %180 = vmatprep.subr.bf16.mxu0 0
    %181 = vmatpush2.bf16.xpose.msra.mxu0 0
    %182 = vmatprep.subr.bf16.mxu0 0
    %183 = vmatpush2.bf16.xpose.msra.mxu0 0
    %184 = vmatprep.subr.bf16.mxu0 0
    %185 = vmatpush2.bf16.xpose.msra.mxu0 0
    %186 = vmatprep.subr.bf16.mxu0 0
    %187 = vmatpush2.bf16.xpose.msra.mxu0 0
    %188 = vmatprep.subr.bf16.mxu0 0
    %189 = vmatpush2.bf16.xpose.msra.mxu0 0
    %190 = vmatprep.subr.bf16.mxu0 0
    %191 = vmatpush2.bf16.xpose.msra.mxu0 0
    %192 = vmatprep.mubr.bf16.mxu0 0
    %193 = vmatmul.mubr.bf16.gmra.mxu0 %v119
    %v194 = vpop.f32.mrf.mxu0
    %v195 = vadd.f32 0.0, %v194
    %v196 = vpop.f32.mrf.mxu0
    %v197 = vpop.f32.mrf.mxu0
    %v198 = vadd.f32 0.0, %v197
    %v199 = vpop.f32.mrf.mxu0
    %200 = vmatprep.mubr.bf16.mxu0 0
    %201 = vmatmul.mubr.bf16.gmra.mxu0 %v122
    %v202 = vpop.f32.mrf.mxu0
    %v203 = vadd.f32 0.0, %v202
    %v204 = vpop.f32.mrf.mxu0
    %v205 = vpop.f32.mrf.mxu0
    %v206 = vadd.f32 0.0, %v205
    %v207 = vpop.f32.mrf.mxu0
    %208 = vmatprep.mubr.bf16.mxu0 0
    %209 = vmatmul.mubr.bf16.gmra.mxu0 %v125
    %v210 = vpop.f32.mrf.mxu0
    %v211 = vadd.f32 0.0, %v210
    %v212 = vpop.f32.mrf.mxu0
    %v213 = vpop.f32.mrf.mxu0
    %v214 = vadd.f32 0.0, %v213
    %v215 = vpop.f32.mrf.mxu0
    %216 = vmatprep.mubr.bf16.mxu0 0
    %217 = vmatmul.mubr.bf16.gmra.mxu0 %v128
    %v218 = vpop.f32.mrf.mxu0
    %v219 = vadd.f32 0.0, %v218
    %v220 = vpop.f32.mrf.mxu0
    %v221 = vpop.f32.mrf.mxu0
    %v222 = vadd.f32 0.0, %v221
    %v223 = vpop.f32.mrf.mxu0
    %224 = vmatprep.mubr.bf16.mxu0 0
    %225 = vmatmul.mubr.bf16.gmra.mxu0 %v131
    %v226 = vpop.f32.mrf.mxu0
    %v227 = vadd.f32 0.0, %v226
    %v228 = vpop.f32.mrf.mxu0
    %v229 = vpop.f32.mrf.mxu0
    %v230 = vadd.f32 0.0, %v229
    %v231 = vpop.f32.mrf.mxu0
    %232 = vmatprep.mubr.bf16.mxu0 0
    %233 = vmatmul.mubr.bf16.gmra.mxu0 %v134
    %v234 = vpop.f32.mrf.mxu0
    %v235 = vadd.f32 0.0, %v234
    %v236 = vpop.f32.mrf.mxu0
    %v237 = vpop.f32.mrf.mxu0
    %v238 = vadd.f32 0.0, %v237
    %v239 = vpop.f32.mrf.mxu0
    %240 = vmatprep.mubr.bf16.mxu0 0
    %241 = vmatmul.mubr.bf16.gmra.mxu0 %v137
    %v242 = vpop.f32.mrf.mxu0
    %v243 = vadd.f32 0.0, %v242
    %v244 = vpop.f32.mrf.mxu0
    %v245 = vpop.f32.mrf.mxu0
    %v246 = vadd.f32 0.0, %v245
    %v247 = vpop.f32.mrf.mxu0
    %248 = vmatprep.mubr.bf16.mxu0 0
    %249 = vmatmul.mubr.bf16.gmra.mxu0 %v140
    %v250 = vpop.f32.mrf.mxu0
    %v251 = vadd.f32 0.0, %v250
    %v252 = vpop.f32.mrf.mxu0
    %v253 = vpop.f32.mrf.mxu0
    %v254 = vadd.f32 0.0, %v253
    %v255 = vpop.f32.mrf.mxu0
    %256 = vmatprep.mubr.bf16.mxu0 0
    %257 = vmatmul.mubr.bf16.gmra.mxu0 %v143
    %v258 = vpop.f32.mrf.mxu0
    %v259 = vadd.f32 0.0, %v258
    %v260 = vpop.f32.mrf.mxu0
    %v261 = vpop.f32.mrf.mxu0
    %v262 = vadd.f32 0.0, %v261
    %v263 = vpop.f32.mrf.mxu0
    %264 = vmatprep.mubr.bf16.mxu0 0
    %265 = vmatmul.mubr.bf16.gmra.mxu0 %v146
    %v266 = vpop.f32.mrf.mxu0
    %v267 = vadd.f32 0.0, %v266
    %v268 = vpop.f32.mrf.mxu0
    %v269 = vpop.f32.mrf.mxu0
    %v270 = vadd.f32 0.0, %v269
    %v271 = vpop.f32.mrf.mxu0
    %272 = vdwg.mxu0
    %v273 = vld [vmem:[%s2] sm:$0xff]
    %v274 = vld [vmem:[%s2 + $0x8] sm:$0xff]
    %v275 = vld [vmem:[%s2 + $0x10] sm:$0xff]
    %v276 = vld [vmem:[%s2 + $0x18] sm:$0xff]
    %v277 = vld [vmem:[%s2 + $0x20] sm:$0xff]
    %v278 = vld [vmem:[%s2 + $0x28] sm:$0xff]
    %v279 = vld [vmem:[%s2 + $0x30] sm:$0xff]
    %v280 = vld [vmem:[%s2 + $0x38] sm:$0xff]
    %v281 = vld [vmem:[%s2 + $0x40] sm:$0xff]
    %v282 = vld [vmem:[%s2 + $0x48] sm:$0xff]
    %v283 = vld [vmem:[%s2 + $0x50] sm:$0xff]
    %v284 = vld [vmem:[%s2 + $0x58] sm:$0xff]
    %v285 = vld [vmem:[%s2 + $0x60] sm:$0xff]
    %v286 = vld [vmem:[%s2 + $0x68] sm:$0xff]
    %v287 = vld [vmem:[%s2 + $0x70] sm:$0xff]
    %v288 = vld [vmem:[%s2 + $0x78] sm:$0xff]
    %v289 = vld [vmem:[%s2 + $0x80] sm:$0xff]
    %v290 = vld [vmem:[%s2 + $0x88] sm:$0xff]
    %v291 = vld [vmem:[%s2 + $0x90] sm:$0xff]
    %v292 = vld [vmem:[%s2 + $0x98] sm:$0xff]
    %v293 = vld [vmem:[%s3] sm:$0x1]
    %295 = vset.pattern.permute.xlu0 14
    %296 = vperm.xlu0 %295, %v273
    %v297 = vpop.permute.xlu0 %296
    %300 = vset.pattern.permute.xlu0 14
    %301 = vperm.xlu0 %300, %v274
    %v302 = vpop.permute.xlu0 %301
    %305 = vset.pattern.permute.xlu0 14
    %306 = vperm.xlu0 %305, %v275
    %v307 = vpop.permute.xlu0 %306
    %310 = vset.pattern.permute.xlu0 14
    %311 = vperm.xlu0 %310, %v276
    %v312 = vpop.permute.xlu0 %311
    %315 = vset.pattern.permute.xlu0 14
    %316 = vperm.xlu0 %315, %v277
    %v317 = vpop.permute.xlu0 %316
    %320 = vset.pattern.permute.xlu0 14
    %321 = vperm.xlu0 %320, %v278
    %v322 = vpop.permute.xlu0 %321
    %325 = vset.pattern.permute.xlu0 14
    %326 = vperm.xlu0 %325, %v279
    %v327 = vpop.permute.xlu0 %326
    %330 = vset.pattern.permute.xlu0 14
    %331 = vperm.xlu0 %330, %v280
    %v332 = vpop.permute.xlu0 %331
    %335 = vset.pattern.permute.xlu0 14
    %336 = vperm.xlu0 %335, %v281
    %v337 = vpop.permute.xlu0 %336
    %340 = vset.pattern.permute.xlu0 14
    %341 = vperm.xlu0 %340, %v282
    %v342 = vpop.permute.xlu0 %341
    %345 = vset.pattern.permute.xlu0 14
    %346 = vperm.xlu0 %345, %v283
    %v347 = vpop.permute.xlu0 %346
    %350 = vset.pattern.permute.xlu0 14
    %351 = vperm.xlu0 %350, %v284
    %v352 = vpop.permute.xlu0 %351
    %355 = vset.pattern.permute.xlu0 14
    %356 = vperm.xlu0 %355, %v285
    %v357 = vpop.permute.xlu0 %356
    %360 = vset.pattern.permute.xlu0 14
    %361 = vperm.xlu0 %360, %v286
    %v362 = vpop.permute.xlu0 %361
    %365 = vset.pattern.permute.xlu0 14
    %366 = vperm.xlu0 %365, %v287
    %v367 = vpop.permute.xlu0 %366
    %370 = vset.pattern.permute.xlu0 14
    %371 = vperm.xlu0 %370, %v288
    %v372 = vpop.permute.xlu0 %371
    %375 = vset.pattern.permute.xlu0 14
    %376 = vperm.xlu0 %375, %v289
    %v377 = vpop.permute.xlu0 %376
    %380 = vset.pattern.permute.xlu0 14
    %381 = vperm.xlu0 %380, %v290
    %v382 = vpop.permute.xlu0 %381
    %385 = vset.pattern.permute.xlu0 14
    %386 = vperm.xlu0 %385, %v291
    %v387 = vpop.permute.xlu0 %386
    %390 = vset.pattern.permute.xlu0 14
    %391 = vperm.xlu0 %390, %v292
    %v392 = vpop.permute.xlu0 %391
    %v395 = vlaneseq
    %v396 = vshrl.u32 %v395, 7
    %v397 = vsub.s32 0, %v396
    %v398 = vrot.slane %v293, %v397
    %vm400 = vcmp.eq.f32.partialorder %v297, %v398
    %vm401 = vcmp.eq.f32.partialorder %v302, %v398
    %vm402 = vcmp.eq.f32.partialorder %v307, %v398
    %vm403 = vcmp.eq.f32.partialorder %v312, %v398
    %vm404 = vcmp.eq.f32.partialorder %v317, %v398
    %vm405 = vcmp.eq.f32.partialorder %v322, %v398
    %vm406 = vcmp.eq.f32.partialorder %v327, %v398
    %vm407 = vcmp.eq.f32.partialorder %v332, %v398
    %vm408 = vcmp.eq.f32.partialorder %v337, %v398
    %vm409 = vcmp.eq.f32.partialorder %v342, %v398
    %vm410 = vcmp.eq.f32.partialorder %v347, %v398
    %vm411 = vcmp.eq.f32.partialorder %v352, %v398
    %vm412 = vcmp.eq.f32.partialorder %v357, %v398
    %vm413 = vcmp.eq.f32.partialorder %v362, %v398
    %vm414 = vcmp.eq.f32.partialorder %v367, %v398
    %vm415 = vcmp.eq.f32.partialorder %v372, %v398
    %vm416 = vcmp.eq.f32.partialorder %v377, %v398
    %vm417 = vcmp.eq.f32.partialorder %v382, %v398
    %vm418 = vcmp.eq.f32.partialorder %v387, %v398
    %vm419 = vcmp.eq.f32.partialorder %v392, %v398
    %440 = vrot.lane.b32.xlu0 %v195, 2
    %v441 = vpop.permute.xlu0 %440
    %442 = vrot.lane.b32.xlu0 %v198, 2
    %v443 = vpop.permute.xlu0 %442
    %444 = vrot.lane.b32.xlu0 %v203, 2
    %v445 = vpop.permute.xlu0 %444
    %446 = vrot.lane.b32.xlu0 %v206, 2
    %v447 = vpop.permute.xlu0 %446
    %448 = vrot.lane.b32.xlu0 %v211, 2
    %v449 = vpop.permute.xlu0 %448
    %450 = vrot.lane.b32.xlu0 %v214, 2
    %v451 = vpop.permute.xlu0 %450
    %452 = vrot.lane.b32.xlu0 %v219, 2
    %v453 = vpop.permute.xlu0 %452
    %454 = vrot.lane.b32.xlu0 %v222, 2
    %v455 = vpop.permute.xlu0 %454
    %456 = vrot.lane.b32.xlu0 %v227, 2
    %v457 = vpop.permute.xlu0 %456
    %458 = vrot.lane.b32.xlu0 %v230, 2
    %v459 = vpop.permute.xlu0 %458
    %460 = vrot.lane.b32.xlu0 %v235, 2
    %v461 = vpop.permute.xlu0 %460
    %462 = vrot.lane.b32.xlu0 %v238, 2
    %v463 = vpop.permute.xlu0 %462
    %464 = vrot.lane.b32.xlu0 %v243, 2
    %v465 = vpop.permute.xlu0 %464
    %466 = vrot.lane.b32.xlu0 %v246, 2
    %v467 = vpop.permute.xlu0 %466
    %468 = vrot.lane.b32.xlu0 %v251, 2
    %v469 = vpop.permute.xlu0 %468
    %470 = vrot.lane.b32.xlu0 %v254, 2
    %v471 = vpop.permute.xlu0 %470
    %472 = vrot.lane.b32.xlu0 %v259, 2
    %v473 = vpop.permute.xlu0 %472
    %474 = vrot.lane.b32.xlu0 %v262, 2
    %v475 = vpop.permute.xlu0 %474
    %476 = vrot.lane.b32.xlu0 %v267, 2
    %v477 = vpop.permute.xlu0 %476
    %478 = vrot.lane.b32.xlu0 %v270, 2
    %v479 = vpop.permute.xlu0 %478
    %v500 = vsel %vm400, %v441, -2.0
    %v501 = vsel %vm401, %v443, -2.0
    %v502 = vsel %vm402, %v445, -2.0
    %v503 = vsel %vm403, %v447, -2.0
    %v504 = vsel %vm404, %v449, -2.0
    %v505 = vsel %vm405, %v451, -2.0
    %v506 = vsel %vm406, %v453, -2.0
    %v507 = vsel %vm407, %v455, -2.0
    %v508 = vsel %vm408, %v457, -2.0
    %v509 = vsel %vm409, %v459, -2.0
    %v510 = vsel %vm410, %v461, -2.0
    %v511 = vsel %vm411, %v463, -2.0
    %v512 = vsel %vm412, %v465, -2.0
    %v513 = vsel %vm413, %v467, -2.0
    %v514 = vsel %vm414, %v469, -2.0
    %v515 = vsel %vm415, %v471, -2.0
    %v516 = vsel %vm416, %v473, -2.0
    %v517 = vsel %vm417, %v475, -2.0
    %v518 = vsel %vm418, %v477, -2.0
    %v519 = vsel %vm419, %v479, -2.0
    %vm520 = vcmp.ge.f32.partialorder %v500, -1.0
    %vm521 = vcmp.ge.f32.partialorder %v501, -1.0
    %vm522 = vcmp.ge.f32.partialorder %v502, -1.0
    %vm523 = vcmp.ge.f32.partialorder %v503, -1.0
    %vm524 = vcmp.ge.f32.partialorder %v504, -1.0
    %vm525 = vcmp.ge.f32.partialorder %v505, -1.0
    %vm526 = vcmp.ge.f32.partialorder %v506, -1.0
    %vm527 = vcmp.ge.f32.partialorder %v507, -1.0
    %vm528 = vcmp.ge.f32.partialorder %v508, -1.0
    %vm529 = vcmp.ge.f32.partialorder %v509, -1.0
    %vm530 = vcmp.ge.f32.partialorder %v510, -1.0
    %vm531 = vcmp.ge.f32.partialorder %v511, -1.0
    %vm532 = vcmp.ge.f32.partialorder %v512, -1.0
    %vm533 = vcmp.ge.f32.partialorder %v513, -1.0
    %vm534 = vcmp.ge.f32.partialorder %v514, -1.0
    %vm535 = vcmp.ge.f32.partialorder %v515, -1.0
    %vm536 = vcmp.ge.f32.partialorder %v516, -1.0
    %vm537 = vcmp.ge.f32.partialorder %v517, -1.0
    %vm538 = vcmp.ge.f32.partialorder %v518, -1.0
    %vm539 = vcmp.ge.f32.partialorder %v519, -1.0
    %540 = vset.pattern.permute.xlu0 0
    %541 = vperm.xlu0 %540, %v273
    %v542 = vpop.permute.xlu0 %541
    %544 = vset.pattern.permute.xlu0 0
    %545 = vperm.xlu0 %544, %v274
    %v546 = vpop.permute.xlu0 %545
    %548 = vset.pattern.permute.xlu0 0
    %549 = vperm.xlu0 %548, %v275
    %v550 = vpop.permute.xlu0 %549
    %552 = vset.pattern.permute.xlu0 0
    %553 = vperm.xlu0 %552, %v276
    %v554 = vpop.permute.xlu0 %553
    %556 = vset.pattern.permute.xlu0 0
    %557 = vperm.xlu0 %556, %v277
    %v558 = vpop.permute.xlu0 %557
    %560 = vset.pattern.permute.xlu0 0
    %561 = vperm.xlu0 %560, %v278
    %v562 = vpop.permute.xlu0 %561
    %564 = vset.pattern.permute.xlu0 0
    %565 = vperm.xlu0 %564, %v279
    %v566 = vpop.permute.xlu0 %565
    %568 = vset.pattern.permute.xlu0 0
    %569 = vperm.xlu0 %568, %v280
    %v570 = vpop.permute.xlu0 %569
    %572 = vset.pattern.permute.xlu0 0
    %573 = vperm.xlu0 %572, %v281
    %v574 = vpop.permute.xlu0 %573
    %576 = vset.pattern.permute.xlu0 0
    %577 = vperm.xlu0 %576, %v282
    %v578 = vpop.permute.xlu0 %577
    %580 = vset.pattern.permute.xlu0 0
    %581 = vperm.xlu0 %580, %v283
    %v582 = vpop.permute.xlu0 %581
    %584 = vset.pattern.permute.xlu0 0
    %585 = vperm.xlu0 %584, %v284
    %v586 = vpop.permute.xlu0 %585
    %588 = vset.pattern.permute.xlu0 0
    %589 = vperm.xlu0 %588, %v285
    %v590 = vpop.permute.xlu0 %589
    %592 = vset.pattern.permute.xlu0 0
    %593 = vperm.xlu0 %592, %v286
    %v594 = vpop.permute.xlu0 %593
    %596 = vset.pattern.permute.xlu0 0
    %597 = vperm.xlu0 %596, %v287
    %v598 = vpop.permute.xlu0 %597
    %600 = vset.pattern.permute.xlu0 0
    %601 = vperm.xlu0 %600, %v288
    %v602 = vpop.permute.xlu0 %601
    %604 = vset.pattern.permute.xlu0 0
    %605 = vperm.xlu0 %604, %v289
    %v606 = vpop.permute.xlu0 %605
    %608 = vset.pattern.permute.xlu0 0
    %609 = vperm.xlu0 %608, %v290
    %v610 = vpop.permute.xlu0 %609
    %612 = vset.pattern.permute.xlu0 0
    %613 = vperm.xlu0 %612, %v291
    %v614 = vpop.permute.xlu0 %613
    %616 = vset.pattern.permute.xlu0 0
    %617 = vperm.xlu0 %616, %v292
    %v618 = vpop.permute.xlu0 %617
    %v620 = vsel %vm520, %v542, 0.0
    %v621 = vsel %vm521, %v546, 0.0
    %v622 = vsel %vm522, %v550, 0.0
    %v623 = vsel %vm523, %v554, 0.0
    %v624 = vsel %vm524, %v558, 0.0
    %v625 = vsel %vm525, %v562, 0.0
    %v626 = vsel %vm526, %v566, 0.0
    %v627 = vsel %vm527, %v570, 0.0
    %v628 = vsel %vm528, %v574, 0.0
    %v629 = vsel %vm529, %v578, 0.0
    %v630 = vsel %vm530, %v582, 0.0
    %v631 = vsel %vm531, %v586, 0.0
    %v632 = vsel %vm532, %v590, 0.0
    %v633 = vsel %vm533, %v594, 0.0
    %v634 = vsel %vm534, %v598, 0.0
    %v635 = vsel %vm535, %v602, 0.0
    %v636 = vsel %vm536, %v606, 0.0
    %v637 = vsel %vm537, %v610, 0.0
    %v638 = vsel %vm538, %v614, 0.0
    %v639 = vsel %vm539, %v618, 0.0
    %v640 = vadd.f32 %v620, 0.0
    %v641 = vadd.f32 %v621, 0.0
    %v642 = vadd.f32 %v622, 0.0
    %v643 = vadd.f32 %v623, 0.0
    %v644 = vadd.f32 %v624, 0.0
    %v645 = vadd.f32 %v625, 0.0
    %v646 = vadd.f32 %v626, 0.0
    %v647 = vadd.f32 %v627, 0.0
    %v648 = vadd.f32 %v628, 0.0
    %v649 = vadd.f32 %v629, 0.0
    %v650 = vadd.f32 %v630, 0.0
    %v651 = vadd.f32 %v631, 0.0
    %v652 = vadd.f32 %v632, 0.0
    %v653 = vadd.f32 %v633, 0.0
    %v654 = vadd.f32 %v634, 0.0
    %v655 = vadd.f32 %v635, 0.0
    %v656 = vadd.f32 %v636, 0.0
    %v657 = vadd.f32 %v637, 0.0
    %v658 = vadd.f32 %v638, 0.0
    %v659 = vadd.f32 %v639, 0.0
    %vm660 = vcmp.ge.f32.partialorder %v500, -0.8181818
    %vm661 = vcmp.ge.f32.partialorder %v501, -0.8181818
    %vm662 = vcmp.ge.f32.partialorder %v502, -0.8181818
    %vm663 = vcmp.ge.f32.partialorder %v503, -0.8181818
    %vm664 = vcmp.ge.f32.partialorder %v504, -0.8181818
    %vm665 = vcmp.ge.f32.partialorder %v505, -0.8181818
    %vm666 = vcmp.ge.f32.partialorder %v506, -0.8181818
    %vm667 = vcmp.ge.f32.partialorder %v507, -0.8181818
    %vm668 = vcmp.ge.f32.partialorder %v508, -0.8181818
    %vm669 = vcmp.ge.f32.partialorder %v509, -0.8181818
    %vm670 = vcmp.ge.f32.partialorder %v510, -0.8181818
    %vm671 = vcmp.ge.f32.partialorder %v511, -0.8181818
    %vm672 = vcmp.ge.f32.partialorder %v512, -0.8181818
    %vm673 = vcmp.ge.f32.partialorder %v513, -0.8181818
    %vm674 = vcmp.ge.f32.partialorder %v514, -0.8181818
    %vm675 = vcmp.ge.f32.partialorder %v515, -0.8181818
    %vm676 = vcmp.ge.f32.partialorder %v516, -0.8181818
    %vm677 = vcmp.ge.f32.partialorder %v517, -0.8181818
    %vm678 = vcmp.ge.f32.partialorder %v518, -0.8181818
    %vm679 = vcmp.ge.f32.partialorder %v519, -0.8181818
    %680 = vset.pattern.permute.xlu0 1
    %681 = vperm.xlu0 %680, %v273
    %v682 = vpop.permute.xlu0 %681
    %684 = vset.pattern.permute.xlu0 1
    %685 = vperm.xlu0 %684, %v274
    %v686 = vpop.permute.xlu0 %685
    %688 = vset.pattern.permute.xlu0 1
    %689 = vperm.xlu0 %688, %v275
    %v690 = vpop.permute.xlu0 %689
    %692 = vset.pattern.permute.xlu0 1
    %693 = vperm.xlu0 %692, %v276
    %v694 = vpop.permute.xlu0 %693
    %696 = vset.pattern.permute.xlu0 1
    %697 = vperm.xlu0 %696, %v277
    %v698 = vpop.permute.xlu0 %697
    %700 = vset.pattern.permute.xlu0 1
    %701 = vperm.xlu0 %700, %v278
    %v702 = vpop.permute.xlu0 %701
    %704 = vset.pattern.permute.xlu0 1
    %705 = vperm.xlu0 %704, %v279
    %v706 = vpop.permute.xlu0 %705
    %708 = vset.pattern.permute.xlu0 1
    %709 = vperm.xlu0 %708, %v280
    %v710 = vpop.permute.xlu0 %709
    %712 = vset.pattern.permute.xlu0 1
    %713 = vperm.xlu0 %712, %v281
    %v714 = vpop.permute.xlu0 %713
    %716 = vset.pattern.permute.xlu0 1
    %717 = vperm.xlu0 %716, %v282
    %v718 = vpop.permute.xlu0 %717
    %720 = vset.pattern.permute.xlu0 1
    %721 = vperm.xlu0 %720, %v283
    %v722 = vpop.permute.xlu0 %721
    %724 = vset.pattern.permute.xlu0 1
    %725 = vperm.xlu0 %724, %v284
    %v726 = vpop.permute.xlu0 %725
    %728 = vset.pattern.permute.xlu0 1
    %729 = vperm.xlu0 %728, %v285
    %v730 = vpop.permute.xlu0 %729
    %732 = vset.pattern.permute.xlu0 1
    %733 = vperm.xlu0 %732, %v286
    %v734 = vpop.permute.xlu0 %733
    %736 = vset.pattern.permute.xlu0 1
    %737 = vperm.xlu0 %736, %v287
    %v738 = vpop.permute.xlu0 %737
    %740 = vset.pattern.permute.xlu0 1
    %741 = vperm.xlu0 %740, %v288
    %v742 = vpop.permute.xlu0 %741
    %744 = vset.pattern.permute.xlu0 1
    %745 = vperm.xlu0 %744, %v289
    %v746 = vpop.permute.xlu0 %745
    %748 = vset.pattern.permute.xlu0 1
    %749 = vperm.xlu0 %748, %v290
    %v750 = vpop.permute.xlu0 %749
    %752 = vset.pattern.permute.xlu0 1
    %753 = vperm.xlu0 %752, %v291
    %v754 = vpop.permute.xlu0 %753
    %756 = vset.pattern.permute.xlu0 1
    %757 = vperm.xlu0 %756, %v292
    %v758 = vpop.permute.xlu0 %757
    %v760 = vsel %vm660, %v682, 0.0
    %v761 = vsel %vm661, %v686, 0.0
    %v762 = vsel %vm662, %v690, 0.0
    %v763 = vsel %vm663, %v694, 0.0
    %v764 = vsel %vm664, %v698, 0.0
    %v765 = vsel %vm665, %v702, 0.0
    %v766 = vsel %vm666, %v706, 0.0
    %v767 = vsel %vm667, %v710, 0.0
    %v768 = vsel %vm668, %v714, 0.0
    %v769 = vsel %vm669, %v718, 0.0
    %v770 = vsel %vm670, %v722, 0.0
    %v771 = vsel %vm671, %v726, 0.0
    %v772 = vsel %vm672, %v730, 0.0
    %v773 = vsel %vm673, %v734, 0.0
    %v774 = vsel %vm674, %v738, 0.0
    %v775 = vsel %vm675, %v742, 0.0
    %v776 = vsel %vm676, %v746, 0.0
    %v777 = vsel %vm677, %v750, 0.0
    %v778 = vsel %vm678, %v754, 0.0
    %v779 = vsel %vm679, %v758, 0.0
    %v780 = vadd.f32 %v640, %v760
    %v781 = vadd.f32 %v641, %v761
    %v782 = vadd.f32 %v642, %v762
    %v783 = vadd.f32 %v643, %v763
    %v784 = vadd.f32 %v644, %v764
    %v785 = vadd.f32 %v645, %v765
    %v786 = vadd.f32 %v646, %v766
    %v787 = vadd.f32 %v647, %v767
    %v788 = vadd.f32 %v648, %v768
    %v789 = vadd.f32 %v649, %v769
    %v790 = vadd.f32 %v650, %v770
    %v791 = vadd.f32 %v651, %v771
    %v792 = vadd.f32 %v652, %v772
    %v793 = vadd.f32 %v653, %v773
    %v794 = vadd.f32 %v654, %v774
    %v795 = vadd.f32 %v655, %v775
    %v796 = vadd.f32 %v656, %v776
    %v797 = vadd.f32 %v657, %v777
    %v798 = vadd.f32 %v658, %v778
    %v799 = vadd.f32 %v659, %v779
    %vm800 = vcmp.ge.f32.partialorder %v500, -0.6363636
    %vm801 = vcmp.ge.f32.partialorder %v501, -0.6363636
    %vm802 = vcmp.ge.f32.partialorder %v502, -0.6363636
    %vm803 = vcmp.ge.f32.partialorder %v503, -0.6363636
    %vm804 = vcmp.ge.f32.partialorder %v504, -0.6363636
    %vm805 = vcmp.ge.f32.partialorder %v505, -0.6363636
    %vm806 = vcmp.ge.f32.partialorder %v506, -0.6363636
    %vm807 = vcmp.ge.f32.partialorder %v507, -0.6363636
    %vm808 = vcmp.ge.f32.partialorder %v508, -0.6363636
    %vm809 = vcmp.ge.f32.partialorder %v509, -0.6363636
    %vm810 = vcmp.ge.f32.partialorder %v510, -0.6363636
    %vm811 = vcmp.ge.f32.partialorder %v511, -0.6363636
    %vm812 = vcmp.ge.f32.partialorder %v512, -0.6363636
    %vm813 = vcmp.ge.f32.partialorder %v513, -0.6363636
    %vm814 = vcmp.ge.f32.partialorder %v514, -0.6363636
    %vm815 = vcmp.ge.f32.partialorder %v515, -0.6363636
    %vm816 = vcmp.ge.f32.partialorder %v516, -0.6363636
    %vm817 = vcmp.ge.f32.partialorder %v517, -0.6363636
    %vm818 = vcmp.ge.f32.partialorder %v518, -0.6363636
    %vm819 = vcmp.ge.f32.partialorder %v519, -0.6363636
    %820 = vset.pattern.permute.xlu0 2
    %821 = vperm.xlu0 %820, %v273
    %v822 = vpop.permute.xlu0 %821
    %824 = vset.pattern.permute.xlu0 2
    %825 = vperm.xlu0 %824, %v274
    %v826 = vpop.permute.xlu0 %825
    %828 = vset.pattern.permute.xlu0 2
    %829 = vperm.xlu0 %828, %v275
    %v830 = vpop.permute.xlu0 %829
    %832 = vset.pattern.permute.xlu0 2
    %833 = vperm.xlu0 %832, %v276
    %v834 = vpop.permute.xlu0 %833
    %836 = vset.pattern.permute.xlu0 2
    %837 = vperm.xlu0 %836, %v277
    %v838 = vpop.permute.xlu0 %837
    %840 = vset.pattern.permute.xlu0 2
    %841 = vperm.xlu0 %840, %v278
    %v842 = vpop.permute.xlu0 %841
    %844 = vset.pattern.permute.xlu0 2
    %845 = vperm.xlu0 %844, %v279
    %v846 = vpop.permute.xlu0 %845
    %848 = vset.pattern.permute.xlu0 2
    %849 = vperm.xlu0 %848, %v280
    %v850 = vpop.permute.xlu0 %849
    %852 = vset.pattern.permute.xlu0 2
    %853 = vperm.xlu0 %852, %v281
    %v854 = vpop.permute.xlu0 %853
    %856 = vset.pattern.permute.xlu0 2
    %857 = vperm.xlu0 %856, %v282
    %v858 = vpop.permute.xlu0 %857
    %860 = vset.pattern.permute.xlu0 2
    %861 = vperm.xlu0 %860, %v283
    %v862 = vpop.permute.xlu0 %861
    %864 = vset.pattern.permute.xlu0 2
    %865 = vperm.xlu0 %864, %v284
    %v866 = vpop.permute.xlu0 %865
    %868 = vset.pattern.permute.xlu0 2
    %869 = vperm.xlu0 %868, %v285
    %v870 = vpop.permute.xlu0 %869
    %872 = vset.pattern.permute.xlu0 2
    %873 = vperm.xlu0 %872, %v286
    %v874 = vpop.permute.xlu0 %873
    %876 = vset.pattern.permute.xlu0 2
    %877 = vperm.xlu0 %876, %v287
    %v878 = vpop.permute.xlu0 %877
    %880 = vset.pattern.permute.xlu0 2
    %881 = vperm.xlu0 %880, %v288
    %v882 = vpop.permute.xlu0 %881
    %884 = vset.pattern.permute.xlu0 2
    %885 = vperm.xlu0 %884, %v289
    %v886 = vpop.permute.xlu0 %885
    %888 = vset.pattern.permute.xlu0 2
    %889 = vperm.xlu0 %888, %v290
    %v890 = vpop.permute.xlu0 %889
    %892 = vset.pattern.permute.xlu0 2
    %893 = vperm.xlu0 %892, %v291
    %v894 = vpop.permute.xlu0 %893
    %896 = vset.pattern.permute.xlu0 2
    %897 = vperm.xlu0 %896, %v292
    %v898 = vpop.permute.xlu0 %897
    %v900 = vsel %vm800, %v822, 0.0
    %v901 = vsel %vm801, %v826, 0.0
    %v902 = vsel %vm802, %v830, 0.0
    %v903 = vsel %vm803, %v834, 0.0
    %v904 = vsel %vm804, %v838, 0.0
    %v905 = vsel %vm805, %v842, 0.0
    %v906 = vsel %vm806, %v846, 0.0
    %v907 = vsel %vm807, %v850, 0.0
    %v908 = vsel %vm808, %v854, 0.0
    %v909 = vsel %vm809, %v858, 0.0
    %v910 = vsel %vm810, %v862, 0.0
    %v911 = vsel %vm811, %v866, 0.0
    %v912 = vsel %vm812, %v870, 0.0
    %v913 = vsel %vm813, %v874, 0.0
    %v914 = vsel %vm814, %v878, 0.0
    %v915 = vsel %vm815, %v882, 0.0
    %v916 = vsel %vm816, %v886, 0.0
    %v917 = vsel %vm817, %v890, 0.0
    %v918 = vsel %vm818, %v894, 0.0
    %v919 = vsel %vm819, %v898, 0.0
    %v920 = vadd.f32 %v780, %v900
    %v921 = vadd.f32 %v781, %v901
    %v922 = vadd.f32 %v782, %v902
    %v923 = vadd.f32 %v783, %v903
    %v924 = vadd.f32 %v784, %v904
    %v925 = vadd.f32 %v785, %v905
    %v926 = vadd.f32 %v786, %v906
    %v927 = vadd.f32 %v787, %v907
    %v928 = vadd.f32 %v788, %v908
    %v929 = vadd.f32 %v789, %v909
    %v930 = vadd.f32 %v790, %v910
    %v931 = vadd.f32 %v791, %v911
    %v932 = vadd.f32 %v792, %v912
    %v933 = vadd.f32 %v793, %v913
    %v934 = vadd.f32 %v794, %v914
    %v935 = vadd.f32 %v795, %v915
    %v936 = vadd.f32 %v796, %v916
    %v937 = vadd.f32 %v797, %v917
    %v938 = vadd.f32 %v798, %v918
    %v939 = vadd.f32 %v799, %v919
    %vm940 = vcmp.ge.f32.partialorder %v500, -0.45454547
    %vm941 = vcmp.ge.f32.partialorder %v501, -0.45454547
    %vm942 = vcmp.ge.f32.partialorder %v502, -0.45454547
    %vm943 = vcmp.ge.f32.partialorder %v503, -0.45454547
    %vm944 = vcmp.ge.f32.partialorder %v504, -0.45454547
    %vm945 = vcmp.ge.f32.partialorder %v505, -0.45454547
    %vm946 = vcmp.ge.f32.partialorder %v506, -0.45454547
    %vm947 = vcmp.ge.f32.partialorder %v507, -0.45454547
    %vm948 = vcmp.ge.f32.partialorder %v508, -0.45454547
    %vm949 = vcmp.ge.f32.partialorder %v509, -0.45454547
    %vm950 = vcmp.ge.f32.partialorder %v510, -0.45454547
    %vm951 = vcmp.ge.f32.partialorder %v511, -0.45454547
    %vm952 = vcmp.ge.f32.partialorder %v512, -0.45454547
    %vm953 = vcmp.ge.f32.partialorder %v513, -0.45454547
    %vm954 = vcmp.ge.f32.partialorder %v514, -0.45454547
    %vm955 = vcmp.ge.f32.partialorder %v515, -0.45454547
    %vm956 = vcmp.ge.f32.partialorder %v516, -0.45454547
    %vm957 = vcmp.ge.f32.partialorder %v517, -0.45454547
    %vm958 = vcmp.ge.f32.partialorder %v518, -0.45454547
    %vm959 = vcmp.ge.f32.partialorder %v519, -0.45454547
    %960 = vset.pattern.permute.xlu0 3
    %961 = vperm.xlu0 %960, %v273
    %v962 = vpop.permute.xlu0 %961
    %964 = vset.pattern.permute.xlu0 3
    %965 = vperm.xlu0 %964, %v274
    %v966 = vpop.permute.xlu0 %965
    %968 = vset.pattern.permute.xlu0 3
    %969 = vperm.xlu0 %968, %v275
    %v970 = vpop.permute.xlu0 %969
    %972 = vset.pattern.permute.xlu0 3
    %973 = vperm.xlu0 %972, %v276
    %v974 = vpop.permute.xlu0 %973
    %976 = vset.pattern.permute.xlu0 3
    %977 = vperm.xlu0 %976, %v277
    %v978 = vpop.permute.xlu0 %977
    %980 = vset.pattern.permute.xlu0 3
    %981 = vperm.xlu0 %980, %v278
    %v982 = vpop.permute.xlu0 %981
    %984 = vset.pattern.permute.xlu0 3
    %985 = vperm.xlu0 %984, %v279
    %v986 = vpop.permute.xlu0 %985
    %988 = vset.pattern.permute.xlu0 3
    %989 = vperm.xlu0 %988, %v280
    %v990 = vpop.permute.xlu0 %989
    %992 = vset.pattern.permute.xlu0 3
    %993 = vperm.xlu0 %992, %v281
    %v994 = vpop.permute.xlu0 %993
    %996 = vset.pattern.permute.xlu0 3
    %997 = vperm.xlu0 %996, %v282
    %v998 = vpop.permute.xlu0 %997
    %1000 = vset.pattern.permute.xlu0 3
    %1001 = vperm.xlu0 %1000, %v283
    %v1002 = vpop.permute.xlu0 %1001
    %1004 = vset.pattern.permute.xlu0 3
    %1005 = vperm.xlu0 %1004, %v284
    %v1006 = vpop.permute.xlu0 %1005
    %1008 = vset.pattern.permute.xlu0 3
    %1009 = vperm.xlu0 %1008, %v285
    %v1010 = vpop.permute.xlu0 %1009
    %1012 = vset.pattern.permute.xlu0 3
    %1013 = vperm.xlu0 %1012, %v286
    %v1014 = vpop.permute.xlu0 %1013
    %1016 = vset.pattern.permute.xlu0 3
    %1017 = vperm.xlu0 %1016, %v287
    %v1018 = vpop.permute.xlu0 %1017
    %1020 = vset.pattern.permute.xlu0 3
    %1021 = vperm.xlu0 %1020, %v288
    %v1022 = vpop.permute.xlu0 %1021
    %1024 = vset.pattern.permute.xlu0 3
    %1025 = vperm.xlu0 %1024, %v289
    %v1026 = vpop.permute.xlu0 %1025
    %1028 = vset.pattern.permute.xlu0 3
    %1029 = vperm.xlu0 %1028, %v290
    %v1030 = vpop.permute.xlu0 %1029
    %1032 = vset.pattern.permute.xlu0 3
    %1033 = vperm.xlu0 %1032, %v291
    %v1034 = vpop.permute.xlu0 %1033
    %1036 = vset.pattern.permute.xlu0 3
    %1037 = vperm.xlu0 %1036, %v292
    %v1038 = vpop.permute.xlu0 %1037
    %v1040 = vsel %vm940, %v962, 0.0
    %v1041 = vsel %vm941, %v966, 0.0
    %v1042 = vsel %vm942, %v970, 0.0
    %v1043 = vsel %vm943, %v974, 0.0
    %v1044 = vsel %vm944, %v978, 0.0
    %v1045 = vsel %vm945, %v982, 0.0
    %v1046 = vsel %vm946, %v986, 0.0
    %v1047 = vsel %vm947, %v990, 0.0
    %v1048 = vsel %vm948, %v994, 0.0
    %v1049 = vsel %vm949, %v998, 0.0
    %v1050 = vsel %vm950, %v1002, 0.0
    %v1051 = vsel %vm951, %v1006, 0.0
    %v1052 = vsel %vm952, %v1010, 0.0
    %v1053 = vsel %vm953, %v1014, 0.0
    %v1054 = vsel %vm954, %v1018, 0.0
    %v1055 = vsel %vm955, %v1022, 0.0
    %v1056 = vsel %vm956, %v1026, 0.0
    %v1057 = vsel %vm957, %v1030, 0.0
    %v1058 = vsel %vm958, %v1034, 0.0
    %v1059 = vsel %vm959, %v1038, 0.0
    %v1060 = vadd.f32 %v920, %v1040
    %v1061 = vadd.f32 %v921, %v1041
    %v1062 = vadd.f32 %v922, %v1042
    %v1063 = vadd.f32 %v923, %v1043
    %v1064 = vadd.f32 %v924, %v1044
    %v1065 = vadd.f32 %v925, %v1045
    %v1066 = vadd.f32 %v926, %v1046
    %v1067 = vadd.f32 %v927, %v1047
    %v1068 = vadd.f32 %v928, %v1048
    %v1069 = vadd.f32 %v929, %v1049
    %v1070 = vadd.f32 %v930, %v1050
    %v1071 = vadd.f32 %v931, %v1051
    %v1072 = vadd.f32 %v932, %v1052
    %v1073 = vadd.f32 %v933, %v1053
    %v1074 = vadd.f32 %v934, %v1054
    %v1075 = vadd.f32 %v935, %v1055
    %v1076 = vadd.f32 %v936, %v1056
    %v1077 = vadd.f32 %v937, %v1057
    %v1078 = vadd.f32 %v938, %v1058
    %v1079 = vadd.f32 %v939, %v1059
    %vm1080 = vcmp.ge.f32.partialorder %v500, -0.27272728
    %vm1081 = vcmp.ge.f32.partialorder %v501, -0.27272728
    %vm1082 = vcmp.ge.f32.partialorder %v502, -0.27272728
    %vm1083 = vcmp.ge.f32.partialorder %v503, -0.27272728
    %vm1084 = vcmp.ge.f32.partialorder %v504, -0.27272728
    %vm1085 = vcmp.ge.f32.partialorder %v505, -0.27272728
    %vm1086 = vcmp.ge.f32.partialorder %v506, -0.27272728
    %vm1087 = vcmp.ge.f32.partialorder %v507, -0.27272728
    %vm1088 = vcmp.ge.f32.partialorder %v508, -0.27272728
    %vm1089 = vcmp.ge.f32.partialorder %v509, -0.27272728
    %vm1090 = vcmp.ge.f32.partialorder %v510, -0.27272728
    %vm1091 = vcmp.ge.f32.partialorder %v511, -0.27272728
    %vm1092 = vcmp.ge.f32.partialorder %v512, -0.27272728
    %vm1093 = vcmp.ge.f32.partialorder %v513, -0.27272728
    %vm1094 = vcmp.ge.f32.partialorder %v514, -0.27272728
    %vm1095 = vcmp.ge.f32.partialorder %v515, -0.27272728
    %vm1096 = vcmp.ge.f32.partialorder %v516, -0.27272728
    %vm1097 = vcmp.ge.f32.partialorder %v517, -0.27272728
    %vm1098 = vcmp.ge.f32.partialorder %v518, -0.27272728
    %vm1099 = vcmp.ge.f32.partialorder %v519, -0.27272728
    %1100 = vset.pattern.permute.xlu0 4
    %1101 = vperm.xlu0 %1100, %v273
    %v1102 = vpop.permute.xlu0 %1101
    %1104 = vset.pattern.permute.xlu0 4
    %1105 = vperm.xlu0 %1104, %v274
    %v1106 = vpop.permute.xlu0 %1105
    %1108 = vset.pattern.permute.xlu0 4
    %1109 = vperm.xlu0 %1108, %v275
    %v1110 = vpop.permute.xlu0 %1109
    %1112 = vset.pattern.permute.xlu0 4
    %1113 = vperm.xlu0 %1112, %v276
    %v1114 = vpop.permute.xlu0 %1113
    %1116 = vset.pattern.permute.xlu0 4
    %1117 = vperm.xlu0 %1116, %v277
    %v1118 = vpop.permute.xlu0 %1117
    %1120 = vset.pattern.permute.xlu0 4
    %1121 = vperm.xlu0 %1120, %v278
    %v1122 = vpop.permute.xlu0 %1121
    %1124 = vset.pattern.permute.xlu0 4
    %1125 = vperm.xlu0 %1124, %v279
    %v1126 = vpop.permute.xlu0 %1125
    %1128 = vset.pattern.permute.xlu0 4
    %1129 = vperm.xlu0 %1128, %v280
    %v1130 = vpop.permute.xlu0 %1129
    %1132 = vset.pattern.permute.xlu0 4
    %1133 = vperm.xlu0 %1132, %v281
    %v1134 = vpop.permute.xlu0 %1133
    %1136 = vset.pattern.permute.xlu0 4
    %1137 = vperm.xlu0 %1136, %v282
    %v1138 = vpop.permute.xlu0 %1137
    %1140 = vset.pattern.permute.xlu0 4
    %1141 = vperm.xlu0 %1140, %v283
    %v1142 = vpop.permute.xlu0 %1141
    %1144 = vset.pattern.permute.xlu0 4
    %1145 = vperm.xlu0 %1144, %v284
    %v1146 = vpop.permute.xlu0 %1145
    %1148 = vset.pattern.permute.xlu0 4
    %1149 = vperm.xlu0 %1148, %v285
    %v1150 = vpop.permute.xlu0 %1149
    %1152 = vset.pattern.permute.xlu0 4
    %1153 = vperm.xlu0 %1152, %v286
    %v1154 = vpop.permute.xlu0 %1153
    %1156 = vset.pattern.permute.xlu0 4
    %1157 = vperm.xlu0 %1156, %v287
    %v1158 = vpop.permute.xlu0 %1157
    %1160 = vset.pattern.permute.xlu0 4
    %1161 = vperm.xlu0 %1160, %v288
    %v1162 = vpop.permute.xlu0 %1161
    %1164 = vset.pattern.permute.xlu0 4
    %1165 = vperm.xlu0 %1164, %v289
    %v1166 = vpop.permute.xlu0 %1165
    %1168 = vset.pattern.permute.xlu0 4
    %1169 = vperm.xlu0 %1168, %v290
    %v1170 = vpop.permute.xlu0 %1169
    %1172 = vset.pattern.permute.xlu0 4
    %1173 = vperm.xlu0 %1172, %v291
    %v1174 = vpop.permute.xlu0 %1173
    %1176 = vset.pattern.permute.xlu0 4
    %1177 = vperm.xlu0 %1176, %v292
    %v1178 = vpop.permute.xlu0 %1177
    %v1180 = vsel %vm1080, %v1102, 0.0
    %v1181 = vsel %vm1081, %v1106, 0.0
    %v1182 = vsel %vm1082, %v1110, 0.0
    %v1183 = vsel %vm1083, %v1114, 0.0
    %v1184 = vsel %vm1084, %v1118, 0.0
    %v1185 = vsel %vm1085, %v1122, 0.0
    %v1186 = vsel %vm1086, %v1126, 0.0
    %v1187 = vsel %vm1087, %v1130, 0.0
    %v1188 = vsel %vm1088, %v1134, 0.0
    %v1189 = vsel %vm1089, %v1138, 0.0
    %v1190 = vsel %vm1090, %v1142, 0.0
    %v1191 = vsel %vm1091, %v1146, 0.0
    %v1192 = vsel %vm1092, %v1150, 0.0
    %v1193 = vsel %vm1093, %v1154, 0.0
    %v1194 = vsel %vm1094, %v1158, 0.0
    %v1195 = vsel %vm1095, %v1162, 0.0
    %v1196 = vsel %vm1096, %v1166, 0.0
    %v1197 = vsel %vm1097, %v1170, 0.0
    %v1198 = vsel %vm1098, %v1174, 0.0
    %v1199 = vsel %vm1099, %v1178, 0.0
    %v1200 = vadd.f32 %v1060, %v1180
    %v1201 = vadd.f32 %v1061, %v1181
    %v1202 = vadd.f32 %v1062, %v1182
    %v1203 = vadd.f32 %v1063, %v1183
    %v1204 = vadd.f32 %v1064, %v1184
    %v1205 = vadd.f32 %v1065, %v1185
    %v1206 = vadd.f32 %v1066, %v1186
    %v1207 = vadd.f32 %v1067, %v1187
    %v1208 = vadd.f32 %v1068, %v1188
    %v1209 = vadd.f32 %v1069, %v1189
    %v1210 = vadd.f32 %v1070, %v1190
    %v1211 = vadd.f32 %v1071, %v1191
    %v1212 = vadd.f32 %v1072, %v1192
    %v1213 = vadd.f32 %v1073, %v1193
    %v1214 = vadd.f32 %v1074, %v1194
    %v1215 = vadd.f32 %v1075, %v1195
    %v1216 = vadd.f32 %v1076, %v1196
    %v1217 = vadd.f32 %v1077, %v1197
    %v1218 = vadd.f32 %v1078, %v1198
    %v1219 = vadd.f32 %v1079, %v1199
    %vm1220 = vcmp.ge.f32.partialorder %v500, -0.09090909
    %vm1221 = vcmp.ge.f32.partialorder %v501, -0.09090909
    %vm1222 = vcmp.ge.f32.partialorder %v502, -0.09090909
    %vm1223 = vcmp.ge.f32.partialorder %v503, -0.09090909
    %vm1224 = vcmp.ge.f32.partialorder %v504, -0.09090909
    %vm1225 = vcmp.ge.f32.partialorder %v505, -0.09090909
    %vm1226 = vcmp.ge.f32.partialorder %v506, -0.09090909
    %vm1227 = vcmp.ge.f32.partialorder %v507, -0.09090909
    %vm1228 = vcmp.ge.f32.partialorder %v508, -0.09090909
    %vm1229 = vcmp.ge.f32.partialorder %v509, -0.09090909
    %vm1230 = vcmp.ge.f32.partialorder %v510, -0.09090909
    %vm1231 = vcmp.ge.f32.partialorder %v511, -0.09090909
    %vm1232 = vcmp.ge.f32.partialorder %v512, -0.09090909
    %vm1233 = vcmp.ge.f32.partialorder %v513, -0.09090909
    %vm1234 = vcmp.ge.f32.partialorder %v514, -0.09090909
    %vm1235 = vcmp.ge.f32.partialorder %v515, -0.09090909
    %vm1236 = vcmp.ge.f32.partialorder %v516, -0.09090909
    %vm1237 = vcmp.ge.f32.partialorder %v517, -0.09090909
    %vm1238 = vcmp.ge.f32.partialorder %v518, -0.09090909
    %vm1239 = vcmp.ge.f32.partialorder %v519, -0.09090909
    %1240 = vset.pattern.permute.xlu0 5
    %1241 = vperm.xlu0 %1240, %v273
    %v1242 = vpop.permute.xlu0 %1241
    %1244 = vset.pattern.permute.xlu0 5
    %1245 = vperm.xlu0 %1244, %v274
    %v1246 = vpop.permute.xlu0 %1245
    %1248 = vset.pattern.permute.xlu0 5
    %1249 = vperm.xlu0 %1248, %v275
    %v1250 = vpop.permute.xlu0 %1249
    %1252 = vset.pattern.permute.xlu0 5
    %1253 = vperm.xlu0 %1252, %v276
    %v1254 = vpop.permute.xlu0 %1253
    %1256 = vset.pattern.permute.xlu0 5
    %1257 = vperm.xlu0 %1256, %v277
    %v1258 = vpop.permute.xlu0 %1257
    %1260 = vset.pattern.permute.xlu0 5
    %1261 = vperm.xlu0 %1260, %v278
    %v1262 = vpop.permute.xlu0 %1261
    %1264 = vset.pattern.permute.xlu0 5
    %1265 = vperm.xlu0 %1264, %v279
    %v1266 = vpop.permute.xlu0 %1265
    %1268 = vset.pattern.permute.xlu0 5
    %1269 = vperm.xlu0 %1268, %v280
    %v1270 = vpop.permute.xlu0 %1269
    %1272 = vset.pattern.permute.xlu0 5
    %1273 = vperm.xlu0 %1272, %v281
    %v1274 = vpop.permute.xlu0 %1273
    %1276 = vset.pattern.permute.xlu0 5
    %1277 = vperm.xlu0 %1276, %v282
    %v1278 = vpop.permute.xlu0 %1277
    %1280 = vset.pattern.permute.xlu0 5
    %1281 = vperm.xlu0 %1280, %v283
    %v1282 = vpop.permute.xlu0 %1281
    %1284 = vset.pattern.permute.xlu0 5
    %1285 = vperm.xlu0 %1284, %v284
    %v1286 = vpop.permute.xlu0 %1285
    %1288 = vset.pattern.permute.xlu0 5
    %1289 = vperm.xlu0 %1288, %v285
    %v1290 = vpop.permute.xlu0 %1289
    %1292 = vset.pattern.permute.xlu0 5
    %1293 = vperm.xlu0 %1292, %v286
    %v1294 = vpop.permute.xlu0 %1293
    %1296 = vset.pattern.permute.xlu0 5
    %1297 = vperm.xlu0 %1296, %v287
    %v1298 = vpop.permute.xlu0 %1297
    %1300 = vset.pattern.permute.xlu0 5
    %1301 = vperm.xlu0 %1300, %v288
    %v1302 = vpop.permute.xlu0 %1301
    %1304 = vset.pattern.permute.xlu0 5
    %1305 = vperm.xlu0 %1304, %v289
    %v1306 = vpop.permute.xlu0 %1305
    %1308 = vset.pattern.permute.xlu0 5
    %1309 = vperm.xlu0 %1308, %v290
    %v1310 = vpop.permute.xlu0 %1309
    %1312 = vset.pattern.permute.xlu0 5
    %1313 = vperm.xlu0 %1312, %v291
    %v1314 = vpop.permute.xlu0 %1313
    %1316 = vset.pattern.permute.xlu0 5
    %1317 = vperm.xlu0 %1316, %v292
    %v1318 = vpop.permute.xlu0 %1317
    %v1320 = vsel %vm1220, %v1242, 0.0
    %v1321 = vsel %vm1221, %v1246, 0.0
    %v1322 = vsel %vm1222, %v1250, 0.0
    %v1323 = vsel %vm1223, %v1254, 0.0
    %v1324 = vsel %vm1224, %v1258, 0.0
    %v1325 = vsel %vm1225, %v1262, 0.0
    %v1326 = vsel %vm1226, %v1266, 0.0
    %v1327 = vsel %vm1227, %v1270, 0.0
    %v1328 = vsel %vm1228, %v1274, 0.0
    %v1329 = vsel %vm1229, %v1278, 0.0
    %v1330 = vsel %vm1230, %v1282, 0.0
    %v1331 = vsel %vm1231, %v1286, 0.0
    %v1332 = vsel %vm1232, %v1290, 0.0
    %v1333 = vsel %vm1233, %v1294, 0.0
    %v1334 = vsel %vm1234, %v1298, 0.0
    %v1335 = vsel %vm1235, %v1302, 0.0
    %v1336 = vsel %vm1236, %v1306, 0.0
    %v1337 = vsel %vm1237, %v1310, 0.0
    %v1338 = vsel %vm1238, %v1314, 0.0
    %v1339 = vsel %vm1239, %v1318, 0.0
    %v1340 = vadd.f32 %v1200, %v1320
    %v1341 = vadd.f32 %v1201, %v1321
    %v1342 = vadd.f32 %v1202, %v1322
    %v1343 = vadd.f32 %v1203, %v1323
    %v1344 = vadd.f32 %v1204, %v1324
    %v1345 = vadd.f32 %v1205, %v1325
    %v1346 = vadd.f32 %v1206, %v1326
    %v1347 = vadd.f32 %v1207, %v1327
    %v1348 = vadd.f32 %v1208, %v1328
    %v1349 = vadd.f32 %v1209, %v1329
    %v1350 = vadd.f32 %v1210, %v1330
    %v1351 = vadd.f32 %v1211, %v1331
    %v1352 = vadd.f32 %v1212, %v1332
    %v1353 = vadd.f32 %v1213, %v1333
    %v1354 = vadd.f32 %v1214, %v1334
    %v1355 = vadd.f32 %v1215, %v1335
    %v1356 = vadd.f32 %v1216, %v1336
    %v1357 = vadd.f32 %v1217, %v1337
    %v1358 = vadd.f32 %v1218, %v1338
    %v1359 = vadd.f32 %v1219, %v1339
    %vm1360 = vcmp.ge.f32.partialorder %v500, 0.09090909
    %vm1361 = vcmp.ge.f32.partialorder %v501, 0.09090909
    %vm1362 = vcmp.ge.f32.partialorder %v502, 0.09090909
    %vm1363 = vcmp.ge.f32.partialorder %v503, 0.09090909
    %vm1364 = vcmp.ge.f32.partialorder %v504, 0.09090909
    %vm1365 = vcmp.ge.f32.partialorder %v505, 0.09090909
    %vm1366 = vcmp.ge.f32.partialorder %v506, 0.09090909
    %vm1367 = vcmp.ge.f32.partialorder %v507, 0.09090909
    %vm1368 = vcmp.ge.f32.partialorder %v508, 0.09090909
    %vm1369 = vcmp.ge.f32.partialorder %v509, 0.09090909
    %vm1370 = vcmp.ge.f32.partialorder %v510, 0.09090909
    %vm1371 = vcmp.ge.f32.partialorder %v511, 0.09090909
    %vm1372 = vcmp.ge.f32.partialorder %v512, 0.09090909
    %vm1373 = vcmp.ge.f32.partialorder %v513, 0.09090909
    %vm1374 = vcmp.ge.f32.partialorder %v514, 0.09090909
    %vm1375 = vcmp.ge.f32.partialorder %v515, 0.09090909
    %vm1376 = vcmp.ge.f32.partialorder %v516, 0.09090909
    %vm1377 = vcmp.ge.f32.partialorder %v517, 0.09090909
    %vm1378 = vcmp.ge.f32.partialorder %v518, 0.09090909
    %vm1379 = vcmp.ge.f32.partialorder %v519, 0.09090909
    %1380 = vset.pattern.permute.xlu0 6
    %1381 = vperm.xlu0 %1380, %v273
    %v1382 = vpop.permute.xlu0 %1381
    %1384 = vset.pattern.permute.xlu0 6
    %1385 = vperm.xlu0 %1384, %v274
    %v1386 = vpop.permute.xlu0 %1385
    %1388 = vset.pattern.permute.xlu0 6
    %1389 = vperm.xlu0 %1388, %v275
    %v1390 = vpop.permute.xlu0 %1389
    %1392 = vset.pattern.permute.xlu0 6
    %1393 = vperm.xlu0 %1392, %v276
    %v1394 = vpop.permute.xlu0 %1393
    %1396 = vset.pattern.permute.xlu0 6
    %1397 = vperm.xlu0 %1396, %v277
    %v1398 = vpop.permute.xlu0 %1397
    %1400 = vset.pattern.permute.xlu0 6
    %1401 = vperm.xlu0 %1400, %v278
    %v1402 = vpop.permute.xlu0 %1401
    %1404 = vset.pattern.permute.xlu0 6
    %1405 = vperm.xlu0 %1404, %v279
    %v1406 = vpop.permute.xlu0 %1405
    %1408 = vset.pattern.permute.xlu0 6
    %1409 = vperm.xlu0 %1408, %v280
    %v1410 = vpop.permute.xlu0 %1409
    %1412 = vset.pattern.permute.xlu0 6
    %1413 = vperm.xlu0 %1412, %v281
    %v1414 = vpop.permute.xlu0 %1413
    %1416 = vset.pattern.permute.xlu0 6
    %1417 = vperm.xlu0 %1416, %v282
    %v1418 = vpop.permute.xlu0 %1417
    %1420 = vset.pattern.permute.xlu0 6
    %1421 = vperm.xlu0 %1420, %v283
    %v1422 = vpop.permute.xlu0 %1421
    %1424 = vset.pattern.permute.xlu0 6
    %1425 = vperm.xlu0 %1424, %v284
    %v1426 = vpop.permute.xlu0 %1425
    %1428 = vset.pattern.permute.xlu0 6
    %1429 = vperm.xlu0 %1428, %v285
    %v1430 = vpop.permute.xlu0 %1429
    %1432 = vset.pattern.permute.xlu0 6
    %1433 = vperm.xlu0 %1432, %v286
    %v1434 = vpop.permute.xlu0 %1433
    %1436 = vset.pattern.permute.xlu0 6
    %1437 = vperm.xlu0 %1436, %v287
    %v1438 = vpop.permute.xlu0 %1437
    %1440 = vset.pattern.permute.xlu0 6
    %1441 = vperm.xlu0 %1440, %v288
    %v1442 = vpop.permute.xlu0 %1441
    %1444 = vset.pattern.permute.xlu0 6
    %1445 = vperm.xlu0 %1444, %v289
    %v1446 = vpop.permute.xlu0 %1445
    %1448 = vset.pattern.permute.xlu0 6
    %1449 = vperm.xlu0 %1448, %v290
    %v1450 = vpop.permute.xlu0 %1449
    %1452 = vset.pattern.permute.xlu0 6
    %1453 = vperm.xlu0 %1452, %v291
    %v1454 = vpop.permute.xlu0 %1453
    %1456 = vset.pattern.permute.xlu0 6
    %1457 = vperm.xlu0 %1456, %v292
    %v1458 = vpop.permute.xlu0 %1457
    %v1460 = vsel %vm1360, %v1382, 0.0
    %v1461 = vsel %vm1361, %v1386, 0.0
    %v1462 = vsel %vm1362, %v1390, 0.0
    %v1463 = vsel %vm1363, %v1394, 0.0
    %v1464 = vsel %vm1364, %v1398, 0.0
    %v1465 = vsel %vm1365, %v1402, 0.0
    %v1466 = vsel %vm1366, %v1406, 0.0
    %v1467 = vsel %vm1367, %v1410, 0.0
    %v1468 = vsel %vm1368, %v1414, 0.0
    %v1469 = vsel %vm1369, %v1418, 0.0
    %v1470 = vsel %vm1370, %v1422, 0.0
    %v1471 = vsel %vm1371, %v1426, 0.0
    %v1472 = vsel %vm1372, %v1430, 0.0
    %v1473 = vsel %vm1373, %v1434, 0.0
    %v1474 = vsel %vm1374, %v1438, 0.0
    %v1475 = vsel %vm1375, %v1442, 0.0
    %v1476 = vsel %vm1376, %v1446, 0.0
    %v1477 = vsel %vm1377, %v1450, 0.0
    %v1478 = vsel %vm1378, %v1454, 0.0
    %v1479 = vsel %vm1379, %v1458, 0.0
    %v1480 = vadd.f32 %v1340, %v1460
    %v1481 = vadd.f32 %v1341, %v1461
    %v1482 = vadd.f32 %v1342, %v1462
    %v1483 = vadd.f32 %v1343, %v1463
    %v1484 = vadd.f32 %v1344, %v1464
    %v1485 = vadd.f32 %v1345, %v1465
    %v1486 = vadd.f32 %v1346, %v1466
    %v1487 = vadd.f32 %v1347, %v1467
    %v1488 = vadd.f32 %v1348, %v1468
    %v1489 = vadd.f32 %v1349, %v1469
    %v1490 = vadd.f32 %v1350, %v1470
    %v1491 = vadd.f32 %v1351, %v1471
    %v1492 = vadd.f32 %v1352, %v1472
    %v1493 = vadd.f32 %v1353, %v1473
    %v1494 = vadd.f32 %v1354, %v1474
    %v1495 = vadd.f32 %v1355, %v1475
    %v1496 = vadd.f32 %v1356, %v1476
    %v1497 = vadd.f32 %v1357, %v1477
    %v1498 = vadd.f32 %v1358, %v1478
    %v1499 = vadd.f32 %v1359, %v1479
    %vm1500 = vcmp.ge.f32.partialorder %v500, 0.27272728
    %vm1501 = vcmp.ge.f32.partialorder %v501, 0.27272728
    %vm1502 = vcmp.ge.f32.partialorder %v502, 0.27272728
    %vm1503 = vcmp.ge.f32.partialorder %v503, 0.27272728
    %vm1504 = vcmp.ge.f32.partialorder %v504, 0.27272728
    %vm1505 = vcmp.ge.f32.partialorder %v505, 0.27272728
    %vm1506 = vcmp.ge.f32.partialorder %v506, 0.27272728
    %vm1507 = vcmp.ge.f32.partialorder %v507, 0.27272728
    %vm1508 = vcmp.ge.f32.partialorder %v508, 0.27272728
    %vm1509 = vcmp.ge.f32.partialorder %v509, 0.27272728
    %vm1510 = vcmp.ge.f32.partialorder %v510, 0.27272728
    %vm1511 = vcmp.ge.f32.partialorder %v511, 0.27272728
    %vm1512 = vcmp.ge.f32.partialorder %v512, 0.27272728
    %vm1513 = vcmp.ge.f32.partialorder %v513, 0.27272728
    %vm1514 = vcmp.ge.f32.partialorder %v514, 0.27272728
    %vm1515 = vcmp.ge.f32.partialorder %v515, 0.27272728
    %vm1516 = vcmp.ge.f32.partialorder %v516, 0.27272728
    %vm1517 = vcmp.ge.f32.partialorder %v517, 0.27272728
    %vm1518 = vcmp.ge.f32.partialorder %v518, 0.27272728
    %vm1519 = vcmp.ge.f32.partialorder %v519, 0.27272728
    %1520 = vset.pattern.permute.xlu0 7
    %1521 = vperm.xlu0 %1520, %v273
    %v1522 = vpop.permute.xlu0 %1521
    %1524 = vset.pattern.permute.xlu0 7
    %1525 = vperm.xlu0 %1524, %v274
    %v1526 = vpop.permute.xlu0 %1525
    %1528 = vset.pattern.permute.xlu0 7
    %1529 = vperm.xlu0 %1528, %v275
    %v1530 = vpop.permute.xlu0 %1529
    %1532 = vset.pattern.permute.xlu0 7
    %1533 = vperm.xlu0 %1532, %v276
    %v1534 = vpop.permute.xlu0 %1533
    %1536 = vset.pattern.permute.xlu0 7
    %1537 = vperm.xlu0 %1536, %v277
    %v1538 = vpop.permute.xlu0 %1537
    %1540 = vset.pattern.permute.xlu0 7
    %1541 = vperm.xlu0 %1540, %v278
    %v1542 = vpop.permute.xlu0 %1541
    %1544 = vset.pattern.permute.xlu0 7
    %1545 = vperm.xlu0 %1544, %v279
    %v1546 = vpop.permute.xlu0 %1545
    %1548 = vset.pattern.permute.xlu0 7
    %1549 = vperm.xlu0 %1548, %v280
    %v1550 = vpop.permute.xlu0 %1549
    %1552 = vset.pattern.permute.xlu0 7
    %1553 = vperm.xlu0 %1552, %v281
    %v1554 = vpop.permute.xlu0 %1553
    %1556 = vset.pattern.permute.xlu0 7
    %1557 = vperm.xlu0 %1556, %v282
    %v1558 = vpop.permute.xlu0 %1557
    %1560 = vset.pattern.permute.xlu0 7
    %1561 = vperm.xlu0 %1560, %v283
    %v1562 = vpop.permute.xlu0 %1561
    %1564 = vset.pattern.permute.xlu0 7
    %1565 = vperm.xlu0 %1564, %v284
    %v1566 = vpop.permute.xlu0 %1565
    %1568 = vset.pattern.permute.xlu0 7
    %1569 = vperm.xlu0 %1568, %v285
    %v1570 = vpop.permute.xlu0 %1569
    %1572 = vset.pattern.permute.xlu0 7
    %1573 = vperm.xlu0 %1572, %v286
    %v1574 = vpop.permute.xlu0 %1573
    %1576 = vset.pattern.permute.xlu0 7
    %1577 = vperm.xlu0 %1576, %v287
    %v1578 = vpop.permute.xlu0 %1577
    %1580 = vset.pattern.permute.xlu0 7
    %1581 = vperm.xlu0 %1580, %v288
    %v1582 = vpop.permute.xlu0 %1581
    %1584 = vset.pattern.permute.xlu0 7
    %1585 = vperm.xlu0 %1584, %v289
    %v1586 = vpop.permute.xlu0 %1585
    %1588 = vset.pattern.permute.xlu0 7
    %1589 = vperm.xlu0 %1588, %v290
    %v1590 = vpop.permute.xlu0 %1589
    %1592 = vset.pattern.permute.xlu0 7
    %1593 = vperm.xlu0 %1592, %v291
    %v1594 = vpop.permute.xlu0 %1593
    %1596 = vset.pattern.permute.xlu0 7
    %1597 = vperm.xlu0 %1596, %v292
    %v1598 = vpop.permute.xlu0 %1597
    %v1600 = vsel %vm1500, %v1522, 0.0
    %v1601 = vsel %vm1501, %v1526, 0.0
    %v1602 = vsel %vm1502, %v1530, 0.0
    %v1603 = vsel %vm1503, %v1534, 0.0
    %v1604 = vsel %vm1504, %v1538, 0.0
    %v1605 = vsel %vm1505, %v1542, 0.0
    %v1606 = vsel %vm1506, %v1546, 0.0
    %v1607 = vsel %vm1507, %v1550, 0.0
    %v1608 = vsel %vm1508, %v1554, 0.0
    %v1609 = vsel %vm1509, %v1558, 0.0
    %v1610 = vsel %vm1510, %v1562, 0.0
    %v1611 = vsel %vm1511, %v1566, 0.0
    %v1612 = vsel %vm1512, %v1570, 0.0
    %v1613 = vsel %vm1513, %v1574, 0.0
    %v1614 = vsel %vm1514, %v1578, 0.0
    %v1615 = vsel %vm1515, %v1582, 0.0
    %v1616 = vsel %vm1516, %v1586, 0.0
    %v1617 = vsel %vm1517, %v1590, 0.0
    %v1618 = vsel %vm1518, %v1594, 0.0
    %v1619 = vsel %vm1519, %v1598, 0.0
    %v1620 = vadd.f32 %v1480, %v1600
    %v1621 = vadd.f32 %v1481, %v1601
    %v1622 = vadd.f32 %v1482, %v1602
    %v1623 = vadd.f32 %v1483, %v1603
    %v1624 = vadd.f32 %v1484, %v1604
    %v1625 = vadd.f32 %v1485, %v1605
    %v1626 = vadd.f32 %v1486, %v1606
    %v1627 = vadd.f32 %v1487, %v1607
    %v1628 = vadd.f32 %v1488, %v1608
    %v1629 = vadd.f32 %v1489, %v1609
    %v1630 = vadd.f32 %v1490, %v1610
    %v1631 = vadd.f32 %v1491, %v1611
    %v1632 = vadd.f32 %v1492, %v1612
    %v1633 = vadd.f32 %v1493, %v1613
    %v1634 = vadd.f32 %v1494, %v1614
    %v1635 = vadd.f32 %v1495, %v1615
    %v1636 = vadd.f32 %v1496, %v1616
    %v1637 = vadd.f32 %v1497, %v1617
    %v1638 = vadd.f32 %v1498, %v1618
    %v1639 = vadd.f32 %v1499, %v1619
    %vm1640 = vcmp.ge.f32.partialorder %v500, 0.45454547
    %vm1641 = vcmp.ge.f32.partialorder %v501, 0.45454547
    %vm1642 = vcmp.ge.f32.partialorder %v502, 0.45454547
    %vm1643 = vcmp.ge.f32.partialorder %v503, 0.45454547
    %vm1644 = vcmp.ge.f32.partialorder %v504, 0.45454547
    %vm1645 = vcmp.ge.f32.partialorder %v505, 0.45454547
    %vm1646 = vcmp.ge.f32.partialorder %v506, 0.45454547
    %vm1647 = vcmp.ge.f32.partialorder %v507, 0.45454547
    %vm1648 = vcmp.ge.f32.partialorder %v508, 0.45454547
    %vm1649 = vcmp.ge.f32.partialorder %v509, 0.45454547
    %vm1650 = vcmp.ge.f32.partialorder %v510, 0.45454547
    %vm1651 = vcmp.ge.f32.partialorder %v511, 0.45454547
    %vm1652 = vcmp.ge.f32.partialorder %v512, 0.45454547
    %vm1653 = vcmp.ge.f32.partialorder %v513, 0.45454547
    %vm1654 = vcmp.ge.f32.partialorder %v514, 0.45454547
    %vm1655 = vcmp.ge.f32.partialorder %v515, 0.45454547
    %vm1656 = vcmp.ge.f32.partialorder %v516, 0.45454547
    %vm1657 = vcmp.ge.f32.partialorder %v517, 0.45454547
    %vm1658 = vcmp.ge.f32.partialorder %v518, 0.45454547
    %vm1659 = vcmp.ge.f32.partialorder %v519, 0.45454547
    %1660 = vset.pattern.permute.xlu0 8
    %1661 = vperm.xlu0 %1660, %v273
    %v1662 = vpop.permute.xlu0 %1661
    %1664 = vset.pattern.permute.xlu0 8
    %1665 = vperm.xlu0 %1664, %v274
    %v1666 = vpop.permute.xlu0 %1665
    %1668 = vset.pattern.permute.xlu0 8
    %1669 = vperm.xlu0 %1668, %v275
    %v1670 = vpop.permute.xlu0 %1669
    %1672 = vset.pattern.permute.xlu0 8
    %1673 = vperm.xlu0 %1672, %v276
    %v1674 = vpop.permute.xlu0 %1673
    %1676 = vset.pattern.permute.xlu0 8
    %1677 = vperm.xlu0 %1676, %v277
    %v1678 = vpop.permute.xlu0 %1677
    %1680 = vset.pattern.permute.xlu0 8
    %1681 = vperm.xlu0 %1680, %v278
    %v1682 = vpop.permute.xlu0 %1681
    %1684 = vset.pattern.permute.xlu0 8
    %1685 = vperm.xlu0 %1684, %v279
    %v1686 = vpop.permute.xlu0 %1685
    %1688 = vset.pattern.permute.xlu0 8
    %1689 = vperm.xlu0 %1688, %v280
    %v1690 = vpop.permute.xlu0 %1689
    %1692 = vset.pattern.permute.xlu0 8
    %1693 = vperm.xlu0 %1692, %v281
    %v1694 = vpop.permute.xlu0 %1693
    %1696 = vset.pattern.permute.xlu0 8
    %1697 = vperm.xlu0 %1696, %v282
    %v1698 = vpop.permute.xlu0 %1697
    %1700 = vset.pattern.permute.xlu0 8
    %1701 = vperm.xlu0 %1700, %v283
    %v1702 = vpop.permute.xlu0 %1701
    %1704 = vset.pattern.permute.xlu0 8
    %1705 = vperm.xlu0 %1704, %v284
    %v1706 = vpop.permute.xlu0 %1705
    %1708 = vset.pattern.permute.xlu0 8
    %1709 = vperm.xlu0 %1708, %v285
    %v1710 = vpop.permute.xlu0 %1709
    %1712 = vset.pattern.permute.xlu0 8
    %1713 = vperm.xlu0 %1712, %v286
    %v1714 = vpop.permute.xlu0 %1713
    %1716 = vset.pattern.permute.xlu0 8
    %1717 = vperm.xlu0 %1716, %v287
    %v1718 = vpop.permute.xlu0 %1717
    %1720 = vset.pattern.permute.xlu0 8
    %1721 = vperm.xlu0 %1720, %v288
    %v1722 = vpop.permute.xlu0 %1721
    %1724 = vset.pattern.permute.xlu0 8
    %1725 = vperm.xlu0 %1724, %v289
    %v1726 = vpop.permute.xlu0 %1725
    %1728 = vset.pattern.permute.xlu0 8
    %1729 = vperm.xlu0 %1728, %v290
    %v1730 = vpop.permute.xlu0 %1729
    %1732 = vset.pattern.permute.xlu0 8
    %1733 = vperm.xlu0 %1732, %v291
    %v1734 = vpop.permute.xlu0 %1733
    %1736 = vset.pattern.permute.xlu0 8
    %1737 = vperm.xlu0 %1736, %v292
    %v1738 = vpop.permute.xlu0 %1737
    %v1740 = vsel %vm1640, %v1662, 0.0
    %v1741 = vsel %vm1641, %v1666, 0.0
    %v1742 = vsel %vm1642, %v1670, 0.0
    %v1743 = vsel %vm1643, %v1674, 0.0
    %v1744 = vsel %vm1644, %v1678, 0.0
    %v1745 = vsel %vm1645, %v1682, 0.0
    %v1746 = vsel %vm1646, %v1686, 0.0
    %v1747 = vsel %vm1647, %v1690, 0.0
    %v1748 = vsel %vm1648, %v1694, 0.0
    %v1749 = vsel %vm1649, %v1698, 0.0
    %v1750 = vsel %vm1650, %v1702, 0.0
    %v1751 = vsel %vm1651, %v1706, 0.0
    %v1752 = vsel %vm1652, %v1710, 0.0
    %v1753 = vsel %vm1653, %v1714, 0.0
    %v1754 = vsel %vm1654, %v1718, 0.0
    %v1755 = vsel %vm1655, %v1722, 0.0
    %v1756 = vsel %vm1656, %v1726, 0.0
    %v1757 = vsel %vm1657, %v1730, 0.0
    %v1758 = vsel %vm1658, %v1734, 0.0
    %v1759 = vsel %vm1659, %v1738, 0.0
    %v1760 = vadd.f32 %v1620, %v1740
    %v1761 = vadd.f32 %v1621, %v1741
    %v1762 = vadd.f32 %v1622, %v1742
    %v1763 = vadd.f32 %v1623, %v1743
    %v1764 = vadd.f32 %v1624, %v1744
    %v1765 = vadd.f32 %v1625, %v1745
    %v1766 = vadd.f32 %v1626, %v1746
    %v1767 = vadd.f32 %v1627, %v1747
    %v1768 = vadd.f32 %v1628, %v1748
    %v1769 = vadd.f32 %v1629, %v1749
    %v1770 = vadd.f32 %v1630, %v1750
    %v1771 = vadd.f32 %v1631, %v1751
    %v1772 = vadd.f32 %v1632, %v1752
    %v1773 = vadd.f32 %v1633, %v1753
    %v1774 = vadd.f32 %v1634, %v1754
    %v1775 = vadd.f32 %v1635, %v1755
    %v1776 = vadd.f32 %v1636, %v1756
    %v1777 = vadd.f32 %v1637, %v1757
    %v1778 = vadd.f32 %v1638, %v1758
    %v1779 = vadd.f32 %v1639, %v1759
    %vm1780 = vcmp.ge.f32.partialorder %v500, 0.6363636
    %vm1781 = vcmp.ge.f32.partialorder %v501, 0.6363636
    %vm1782 = vcmp.ge.f32.partialorder %v502, 0.6363636
    %vm1783 = vcmp.ge.f32.partialorder %v503, 0.6363636
    %vm1784 = vcmp.ge.f32.partialorder %v504, 0.6363636
    %vm1785 = vcmp.ge.f32.partialorder %v505, 0.6363636
    %vm1786 = vcmp.ge.f32.partialorder %v506, 0.6363636
    %vm1787 = vcmp.ge.f32.partialorder %v507, 0.6363636
    %vm1788 = vcmp.ge.f32.partialorder %v508, 0.6363636
    %vm1789 = vcmp.ge.f32.partialorder %v509, 0.6363636
    %vm1790 = vcmp.ge.f32.partialorder %v510, 0.6363636
    %vm1791 = vcmp.ge.f32.partialorder %v511, 0.6363636
    %vm1792 = vcmp.ge.f32.partialorder %v512, 0.6363636
    %vm1793 = vcmp.ge.f32.partialorder %v513, 0.6363636
    %vm1794 = vcmp.ge.f32.partialorder %v514, 0.6363636
    %vm1795 = vcmp.ge.f32.partialorder %v515, 0.6363636
    %vm1796 = vcmp.ge.f32.partialorder %v516, 0.6363636
    %vm1797 = vcmp.ge.f32.partialorder %v517, 0.6363636
    %vm1798 = vcmp.ge.f32.partialorder %v518, 0.6363636
    %vm1799 = vcmp.ge.f32.partialorder %v519, 0.6363636
    %1800 = vset.pattern.permute.xlu0 9
    %1801 = vperm.xlu0 %1800, %v273
    %v1802 = vpop.permute.xlu0 %1801
    %1804 = vset.pattern.permute.xlu0 9
    %1805 = vperm.xlu0 %1804, %v274
    %v1806 = vpop.permute.xlu0 %1805
    %1808 = vset.pattern.permute.xlu0 9
    %1809 = vperm.xlu0 %1808, %v275
    %v1810 = vpop.permute.xlu0 %1809
    %1812 = vset.pattern.permute.xlu0 9
    %1813 = vperm.xlu0 %1812, %v276
    %v1814 = vpop.permute.xlu0 %1813
    %1816 = vset.pattern.permute.xlu0 9
    %1817 = vperm.xlu0 %1816, %v277
    %v1818 = vpop.permute.xlu0 %1817
    %1820 = vset.pattern.permute.xlu0 9
    %1821 = vperm.xlu0 %1820, %v278
    %v1822 = vpop.permute.xlu0 %1821
    %1824 = vset.pattern.permute.xlu0 9
    %1825 = vperm.xlu0 %1824, %v279
    %v1826 = vpop.permute.xlu0 %1825
    %1828 = vset.pattern.permute.xlu0 9
    %1829 = vperm.xlu0 %1828, %v280
    %v1830 = vpop.permute.xlu0 %1829
    %1832 = vset.pattern.permute.xlu0 9
    %1833 = vperm.xlu0 %1832, %v281
    %v1834 = vpop.permute.xlu0 %1833
    %1836 = vset.pattern.permute.xlu0 9
    %1837 = vperm.xlu0 %1836, %v282
    %v1838 = vpop.permute.xlu0 %1837
    %1840 = vset.pattern.permute.xlu0 9
    %1841 = vperm.xlu0 %1840, %v283
    %v1842 = vpop.permute.xlu0 %1841
    %1844 = vset.pattern.permute.xlu0 9
    %1845 = vperm.xlu0 %1844, %v284
    %v1846 = vpop.permute.xlu0 %1845
    %1848 = vset.pattern.permute.xlu0 9
    %1849 = vperm.xlu0 %1848, %v285
    %v1850 = vpop.permute.xlu0 %1849
    %1852 = vset.pattern.permute.xlu0 9
    %1853 = vperm.xlu0 %1852, %v286
    %v1854 = vpop.permute.xlu0 %1853
    %1856 = vset.pattern.permute.xlu0 9
    %1857 = vperm.xlu0 %1856, %v287
    %v1858 = vpop.permute.xlu0 %1857
    %1860 = vset.pattern.permute.xlu0 9
    %1861 = vperm.xlu0 %1860, %v288
    %v1862 = vpop.permute.xlu0 %1861
    %1864 = vset.pattern.permute.xlu0 9
    %1865 = vperm.xlu0 %1864, %v289
    %v1866 = vpop.permute.xlu0 %1865
    %1868 = vset.pattern.permute.xlu0 9
    %1869 = vperm.xlu0 %1868, %v290
    %v1870 = vpop.permute.xlu0 %1869
    %1872 = vset.pattern.permute.xlu0 9
    %1873 = vperm.xlu0 %1872, %v291
    %v1874 = vpop.permute.xlu0 %1873
    %1876 = vset.pattern.permute.xlu0 9
    %1877 = vperm.xlu0 %1876, %v292
    %v1878 = vpop.permute.xlu0 %1877
    %v1880 = vsel %vm1780, %v1802, 0.0
    %v1881 = vsel %vm1781, %v1806, 0.0
    %v1882 = vsel %vm1782, %v1810, 0.0
    %v1883 = vsel %vm1783, %v1814, 0.0
    %v1884 = vsel %vm1784, %v1818, 0.0
    %v1885 = vsel %vm1785, %v1822, 0.0
    %v1886 = vsel %vm1786, %v1826, 0.0
    %v1887 = vsel %vm1787, %v1830, 0.0
    %v1888 = vsel %vm1788, %v1834, 0.0
    %v1889 = vsel %vm1789, %v1838, 0.0
    %v1890 = vsel %vm1790, %v1842, 0.0
    %v1891 = vsel %vm1791, %v1846, 0.0
    %v1892 = vsel %vm1792, %v1850, 0.0
    %v1893 = vsel %vm1793, %v1854, 0.0
    %v1894 = vsel %vm1794, %v1858, 0.0
    %v1895 = vsel %vm1795, %v1862, 0.0
    %v1896 = vsel %vm1796, %v1866, 0.0
    %v1897 = vsel %vm1797, %v1870, 0.0
    %v1898 = vsel %vm1798, %v1874, 0.0
    %v1899 = vsel %vm1799, %v1878, 0.0
    %v1900 = vadd.f32 %v1760, %v1880
    %v1901 = vadd.f32 %v1761, %v1881
    %v1902 = vadd.f32 %v1762, %v1882
    %v1903 = vadd.f32 %v1763, %v1883
    %v1904 = vadd.f32 %v1764, %v1884
    %v1905 = vadd.f32 %v1765, %v1885
    %v1906 = vadd.f32 %v1766, %v1886
    %v1907 = vadd.f32 %v1767, %v1887
    %v1908 = vadd.f32 %v1768, %v1888
    %v1909 = vadd.f32 %v1769, %v1889
    %v1910 = vadd.f32 %v1770, %v1890
    %v1911 = vadd.f32 %v1771, %v1891
    %v1912 = vadd.f32 %v1772, %v1892
    %v1913 = vadd.f32 %v1773, %v1893
    %v1914 = vadd.f32 %v1774, %v1894
    %v1915 = vadd.f32 %v1775, %v1895
    %v1916 = vadd.f32 %v1776, %v1896
    %v1917 = vadd.f32 %v1777, %v1897
    %v1918 = vadd.f32 %v1778, %v1898
    %v1919 = vadd.f32 %v1779, %v1899
    %vm1920 = vcmp.ge.f32.partialorder %v500, 0.8181818
    %vm1921 = vcmp.ge.f32.partialorder %v501, 0.8181818
    %vm1922 = vcmp.ge.f32.partialorder %v502, 0.8181818
    %vm1923 = vcmp.ge.f32.partialorder %v503, 0.8181818
    %vm1924 = vcmp.ge.f32.partialorder %v504, 0.8181818
    %vm1925 = vcmp.ge.f32.partialorder %v505, 0.8181818
    %vm1926 = vcmp.ge.f32.partialorder %v506, 0.8181818
    %vm1927 = vcmp.ge.f32.partialorder %v507, 0.8181818
    %vm1928 = vcmp.ge.f32.partialorder %v508, 0.8181818
    %vm1929 = vcmp.ge.f32.partialorder %v509, 0.8181818
    %vm1930 = vcmp.ge.f32.partialorder %v510, 0.8181818
    %vm1931 = vcmp.ge.f32.partialorder %v511, 0.8181818
    %vm1932 = vcmp.ge.f32.partialorder %v512, 0.8181818
    %vm1933 = vcmp.ge.f32.partialorder %v513, 0.8181818
    %vm1934 = vcmp.ge.f32.partialorder %v514, 0.8181818
    %vm1935 = vcmp.ge.f32.partialorder %v515, 0.8181818
    %vm1936 = vcmp.ge.f32.partialorder %v516, 0.8181818
    %vm1937 = vcmp.ge.f32.partialorder %v517, 0.8181818
    %vm1938 = vcmp.ge.f32.partialorder %v518, 0.8181818
    %vm1939 = vcmp.ge.f32.partialorder %v519, 0.8181818
    %1940 = vset.pattern.permute.xlu0 10
    %1941 = vperm.xlu0 %1940, %v273
    %v1942 = vpop.permute.xlu0 %1941
    %1944 = vset.pattern.permute.xlu0 10
    %1945 = vperm.xlu0 %1944, %v274
    %v1946 = vpop.permute.xlu0 %1945
    %1948 = vset.pattern.permute.xlu0 10
    %1949 = vperm.xlu0 %1948, %v275
    %v1950 = vpop.permute.xlu0 %1949
    %1952 = vset.pattern.permute.xlu0 10
    %1953 = vperm.xlu0 %1952, %v276
    %v1954 = vpop.permute.xlu0 %1953
    %1956 = vset.pattern.permute.xlu0 10
    %1957 = vperm.xlu0 %1956, %v277
    %v1958 = vpop.permute.xlu0 %1957
    %1960 = vset.pattern.permute.xlu0 10
    %1961 = vperm.xlu0 %1960, %v278
    %v1962 = vpop.permute.xlu0 %1961
    %1964 = vset.pattern.permute.xlu0 10
    %1965 = vperm.xlu0 %1964, %v279
    %v1966 = vpop.permute.xlu0 %1965
    %1968 = vset.pattern.permute.xlu0 10
    %1969 = vperm.xlu0 %1968, %v280
    %v1970 = vpop.permute.xlu0 %1969
    %1972 = vset.pattern.permute.xlu0 10
    %1973 = vperm.xlu0 %1972, %v281
    %v1974 = vpop.permute.xlu0 %1973
    %1976 = vset.pattern.permute.xlu0 10
    %1977 = vperm.xlu0 %1976, %v282
    %v1978 = vpop.permute.xlu0 %1977
    %1980 = vset.pattern.permute.xlu0 10
    %1981 = vperm.xlu0 %1980, %v283
    %v1982 = vpop.permute.xlu0 %1981
    %1984 = vset.pattern.permute.xlu0 10
    %1985 = vperm.xlu0 %1984, %v284
    %v1986 = vpop.permute.xlu0 %1985
    %1988 = vset.pattern.permute.xlu0 10
    %1989 = vperm.xlu0 %1988, %v285
    %v1990 = vpop.permute.xlu0 %1989
    %1992 = vset.pattern.permute.xlu0 10
    %1993 = vperm.xlu0 %1992, %v286
    %v1994 = vpop.permute.xlu0 %1993
    %1996 = vset.pattern.permute.xlu0 10
    %1997 = vperm.xlu0 %1996, %v287
    %v1998 = vpop.permute.xlu0 %1997
    %2000 = vset.pattern.permute.xlu0 10
    %2001 = vperm.xlu0 %2000, %v288
    %v2002 = vpop.permute.xlu0 %2001
    %2004 = vset.pattern.permute.xlu0 10
    %2005 = vperm.xlu0 %2004, %v289
    %v2006 = vpop.permute.xlu0 %2005
    %2008 = vset.pattern.permute.xlu0 10
    %2009 = vperm.xlu0 %2008, %v290
    %v2010 = vpop.permute.xlu0 %2009
    %2012 = vset.pattern.permute.xlu0 10
    %2013 = vperm.xlu0 %2012, %v291
    %v2014 = vpop.permute.xlu0 %2013
    %2016 = vset.pattern.permute.xlu0 10
    %2017 = vperm.xlu0 %2016, %v292
    %v2018 = vpop.permute.xlu0 %2017
    %v2020 = vsel %vm1920, %v1942, 0.0
    %v2021 = vsel %vm1921, %v1946, 0.0
    %v2022 = vsel %vm1922, %v1950, 0.0
    %v2023 = vsel %vm1923, %v1954, 0.0
    %v2024 = vsel %vm1924, %v1958, 0.0
    %v2025 = vsel %vm1925, %v1962, 0.0
    %v2026 = vsel %vm1926, %v1966, 0.0
    %v2027 = vsel %vm1927, %v1970, 0.0
    %v2028 = vsel %vm1928, %v1974, 0.0
    %v2029 = vsel %vm1929, %v1978, 0.0
    %v2030 = vsel %vm1930, %v1982, 0.0
    %v2031 = vsel %vm1931, %v1986, 0.0
    %v2032 = vsel %vm1932, %v1990, 0.0
    %v2033 = vsel %vm1933, %v1994, 0.0
    %v2034 = vsel %vm1934, %v1998, 0.0
    %v2035 = vsel %vm1935, %v2002, 0.0
    %v2036 = vsel %vm1936, %v2006, 0.0
    %v2037 = vsel %vm1937, %v2010, 0.0
    %v2038 = vsel %vm1938, %v2014, 0.0
    %v2039 = vsel %vm1939, %v2018, 0.0
    %v2040 = vadd.f32 %v1900, %v2020
    %v2041 = vadd.f32 %v1901, %v2021
    %v2042 = vadd.f32 %v1902, %v2022
    %v2043 = vadd.f32 %v1903, %v2023
    %v2044 = vadd.f32 %v1904, %v2024
    %v2045 = vadd.f32 %v1905, %v2025
    %v2046 = vadd.f32 %v1906, %v2026
    %v2047 = vadd.f32 %v1907, %v2027
    %v2048 = vadd.f32 %v1908, %v2028
    %v2049 = vadd.f32 %v1909, %v2029
    %v2050 = vadd.f32 %v1910, %v2030
    %v2051 = vadd.f32 %v1911, %v2031
    %v2052 = vadd.f32 %v1912, %v2032
    %v2053 = vadd.f32 %v1913, %v2033
    %v2054 = vadd.f32 %v1914, %v2034
    %v2055 = vadd.f32 %v1915, %v2035
    %v2056 = vadd.f32 %v1916, %v2036
    %v2057 = vadd.f32 %v1917, %v2037
    %v2058 = vadd.f32 %v1918, %v2038
    %v2059 = vadd.f32 %v1919, %v2039
    %vm2060 = vcmp.ge.f32.partialorder %v500, 1.0
    %vm2061 = vcmp.ge.f32.partialorder %v501, 1.0
    %vm2062 = vcmp.ge.f32.partialorder %v502, 1.0
    %vm2063 = vcmp.ge.f32.partialorder %v503, 1.0
    %vm2064 = vcmp.ge.f32.partialorder %v504, 1.0
    %vm2065 = vcmp.ge.f32.partialorder %v505, 1.0
    %vm2066 = vcmp.ge.f32.partialorder %v506, 1.0
    %vm2067 = vcmp.ge.f32.partialorder %v507, 1.0
    %vm2068 = vcmp.ge.f32.partialorder %v508, 1.0
    %vm2069 = vcmp.ge.f32.partialorder %v509, 1.0
    %vm2070 = vcmp.ge.f32.partialorder %v510, 1.0
    %vm2071 = vcmp.ge.f32.partialorder %v511, 1.0
    %vm2072 = vcmp.ge.f32.partialorder %v512, 1.0
    %vm2073 = vcmp.ge.f32.partialorder %v513, 1.0
    %vm2074 = vcmp.ge.f32.partialorder %v514, 1.0
    %vm2075 = vcmp.ge.f32.partialorder %v515, 1.0
    %vm2076 = vcmp.ge.f32.partialorder %v516, 1.0
    %vm2077 = vcmp.ge.f32.partialorder %v517, 1.0
    %vm2078 = vcmp.ge.f32.partialorder %v518, 1.0
    %vm2079 = vcmp.ge.f32.partialorder %v519, 1.0
    %2080 = vset.pattern.permute.xlu0 11
    %2081 = vperm.xlu0 %2080, %v273
    %v2082 = vpop.permute.xlu0 %2081
    %2084 = vset.pattern.permute.xlu0 11
    %2085 = vperm.xlu0 %2084, %v274
    %v2086 = vpop.permute.xlu0 %2085
    %2088 = vset.pattern.permute.xlu0 11
    %2089 = vperm.xlu0 %2088, %v275
    %v2090 = vpop.permute.xlu0 %2089
    %2092 = vset.pattern.permute.xlu0 11
    %2093 = vperm.xlu0 %2092, %v276
    %v2094 = vpop.permute.xlu0 %2093
    %2096 = vset.pattern.permute.xlu0 11
    %2097 = vperm.xlu0 %2096, %v277
    %v2098 = vpop.permute.xlu0 %2097
    %2100 = vset.pattern.permute.xlu0 11
    %2101 = vperm.xlu0 %2100, %v278
    %v2102 = vpop.permute.xlu0 %2101
    %2104 = vset.pattern.permute.xlu0 11
    %2105 = vperm.xlu0 %2104, %v279
    %v2106 = vpop.permute.xlu0 %2105
    %2108 = vset.pattern.permute.xlu0 11
    %2109 = vperm.xlu0 %2108, %v280
    %v2110 = vpop.permute.xlu0 %2109
    %2112 = vset.pattern.permute.xlu0 11
    %2113 = vperm.xlu0 %2112, %v281
    %v2114 = vpop.permute.xlu0 %2113
    %2116 = vset.pattern.permute.xlu0 11
    %2117 = vperm.xlu0 %2116, %v282
    %v2118 = vpop.permute.xlu0 %2117
    %2120 = vset.pattern.permute.xlu0 11
    %2121 = vperm.xlu0 %2120, %v283
    %v2122 = vpop.permute.xlu0 %2121
    %2124 = vset.pattern.permute.xlu0 11
    %2125 = vperm.xlu0 %2124, %v284
    %v2126 = vpop.permute.xlu0 %2125
    %2128 = vset.pattern.permute.xlu0 11
    %2129 = vperm.xlu0 %2128, %v285
    %v2130 = vpop.permute.xlu0 %2129
    %2132 = vset.pattern.permute.xlu0 11
    %2133 = vperm.xlu0 %2132, %v286
    %v2134 = vpop.permute.xlu0 %2133
    %2136 = vset.pattern.permute.xlu0 11
    %2137 = vperm.xlu0 %2136, %v287
    %v2138 = vpop.permute.xlu0 %2137
    %2140 = vset.pattern.permute.xlu0 11
    %2141 = vperm.xlu0 %2140, %v288
    %v2142 = vpop.permute.xlu0 %2141
    %2144 = vset.pattern.permute.xlu0 11
    %2145 = vperm.xlu0 %2144, %v289
    %v2146 = vpop.permute.xlu0 %2145
    %2148 = vset.pattern.permute.xlu0 11
    %2149 = vperm.xlu0 %2148, %v290
    %v2150 = vpop.permute.xlu0 %2149
    %2152 = vset.pattern.permute.xlu0 11
    %2153 = vperm.xlu0 %2152, %v291
    %v2154 = vpop.permute.xlu0 %2153
    %2156 = vset.pattern.permute.xlu0 11
    %2157 = vperm.xlu0 %2156, %v292
    %v2158 = vpop.permute.xlu0 %2157
    %v2160 = vsel %vm2060, %v2082, 0.0
    %v2161 = vsel %vm2061, %v2086, 0.0
    %v2162 = vsel %vm2062, %v2090, 0.0
    %v2163 = vsel %vm2063, %v2094, 0.0
    %v2164 = vsel %vm2064, %v2098, 0.0
    %v2165 = vsel %vm2065, %v2102, 0.0
    %v2166 = vsel %vm2066, %v2106, 0.0
    %v2167 = vsel %vm2067, %v2110, 0.0
    %v2168 = vsel %vm2068, %v2114, 0.0
    %v2169 = vsel %vm2069, %v2118, 0.0
    %v2170 = vsel %vm2070, %v2122, 0.0
    %v2171 = vsel %vm2071, %v2126, 0.0
    %v2172 = vsel %vm2072, %v2130, 0.0
    %v2173 = vsel %vm2073, %v2134, 0.0
    %v2174 = vsel %vm2074, %v2138, 0.0
    %v2175 = vsel %vm2075, %v2142, 0.0
    %v2176 = vsel %vm2076, %v2146, 0.0
    %v2177 = vsel %vm2077, %v2150, 0.0
    %v2178 = vsel %vm2078, %v2154, 0.0
    %v2179 = vsel %vm2079, %v2158, 0.0
    %v2180 = vadd.f32 %v2040, %v2160
    %v2181 = vadd.f32 %v2041, %v2161
    %v2182 = vadd.f32 %v2042, %v2162
    %v2183 = vadd.f32 %v2043, %v2163
    %v2184 = vadd.f32 %v2044, %v2164
    %v2185 = vadd.f32 %v2045, %v2165
    %v2186 = vadd.f32 %v2046, %v2166
    %v2187 = vadd.f32 %v2047, %v2167
    %v2188 = vadd.f32 %v2048, %v2168
    %v2189 = vadd.f32 %v2049, %v2169
    %v2190 = vadd.f32 %v2050, %v2170
    %v2191 = vadd.f32 %v2051, %v2171
    %v2192 = vadd.f32 %v2052, %v2172
    %v2193 = vadd.f32 %v2053, %v2173
    %v2194 = vadd.f32 %v2054, %v2174
    %v2195 = vadd.f32 %v2055, %v2175
    %v2196 = vadd.f32 %v2056, %v2176
    %v2197 = vadd.f32 %v2057, %v2177
    %v2198 = vadd.f32 %v2058, %v2178
    %v2199 = vadd.f32 %v2059, %v2179
    %2220 = vrot.lane.b32.xlu0 %v2180, 126
    %v2221 = vpop.permute.xlu0 %2220
    %2222 = vrot.lane.b32.xlu0 %v2181, 126
    %v2223 = vpop.permute.xlu0 %2222
    %2224 = vrot.lane.b32.xlu0 %v2182, 126
    %v2225 = vpop.permute.xlu0 %2224
    %2226 = vrot.lane.b32.xlu0 %v2183, 126
    %v2227 = vpop.permute.xlu0 %2226
    %2228 = vrot.lane.b32.xlu0 %v2184, 126
    %v2229 = vpop.permute.xlu0 %2228
    %2230 = vrot.lane.b32.xlu0 %v2185, 126
    %v2231 = vpop.permute.xlu0 %2230
    %2232 = vrot.lane.b32.xlu0 %v2186, 126
    %v2233 = vpop.permute.xlu0 %2232
    %2234 = vrot.lane.b32.xlu0 %v2187, 126
    %v2235 = vpop.permute.xlu0 %2234
    %2236 = vrot.lane.b32.xlu0 %v2188, 126
    %v2237 = vpop.permute.xlu0 %2236
    %2238 = vrot.lane.b32.xlu0 %v2189, 126
    %v2239 = vpop.permute.xlu0 %2238
    %2240 = vrot.lane.b32.xlu0 %v2190, 126
    %v2241 = vpop.permute.xlu0 %2240
    %2242 = vrot.lane.b32.xlu0 %v2191, 126
    %v2243 = vpop.permute.xlu0 %2242
    %2244 = vrot.lane.b32.xlu0 %v2192, 126
    %v2245 = vpop.permute.xlu0 %2244
    %2246 = vrot.lane.b32.xlu0 %v2193, 126
    %v2247 = vpop.permute.xlu0 %2246
    %2248 = vrot.lane.b32.xlu0 %v2194, 126
    %v2249 = vpop.permute.xlu0 %2248
    %2250 = vrot.lane.b32.xlu0 %v2195, 126
    %v2251 = vpop.permute.xlu0 %2250
    %2252 = vrot.lane.b32.xlu0 %v2196, 126
    %v2253 = vpop.permute.xlu0 %2252
    %2254 = vrot.lane.b32.xlu0 %v2197, 126
    %v2255 = vpop.permute.xlu0 %2254
    %2256 = vrot.lane.b32.xlu0 %v2198, 126
    %v2257 = vpop.permute.xlu0 %2256
    %2258 = vrot.lane.b32.xlu0 %v2199, 126
    %v2259 = vpop.permute.xlu0 %2258
    %vm2280 = vcmask 523264
    %v2281 = vsel %vm2280, %v2221, 0.0
    %2282 = vadd.xlane.f32.xlu0 %v2281
    %v2283 = vpop.xlane.xlu0 %2282
    %v2284 = vsel %vm2280, %v2223, 0.0
    %2285 = vadd.xlane.f32.xlu0 %v2284
    %v2286 = vpop.xlane.xlu0 %2285
    %v2287 = vsel %vm2280, %v2225, 0.0
    %2288 = vadd.xlane.f32.xlu0 %v2287
    %v2289 = vpop.xlane.xlu0 %2288
    %v2290 = vsel %vm2280, %v2227, 0.0
    %2291 = vadd.xlane.f32.xlu0 %v2290
    %v2292 = vpop.xlane.xlu0 %2291
    %v2293 = vsel %vm2280, %v2229, 0.0
    %2294 = vadd.xlane.f32.xlu0 %v2293
    %v2295 = vpop.xlane.xlu0 %2294
    %v2296 = vsel %vm2280, %v2231, 0.0
    %2297 = vadd.xlane.f32.xlu0 %v2296
    %v2298 = vpop.xlane.xlu0 %2297
    %v2299 = vsel %vm2280, %v2233, 0.0
    %2300 = vadd.xlane.f32.xlu0 %v2299
    %v2301 = vpop.xlane.xlu0 %2300
    %v2302 = vsel %vm2280, %v2235, 0.0
    %2303 = vadd.xlane.f32.xlu0 %v2302
    %v2304 = vpop.xlane.xlu0 %2303
    %v2305 = vsel %vm2280, %v2237, 0.0
    %2306 = vadd.xlane.f32.xlu0 %v2305
    %v2307 = vpop.xlane.xlu0 %2306
    %v2308 = vsel %vm2280, %v2239, 0.0
    %2309 = vadd.xlane.f32.xlu0 %v2308
    %v2310 = vpop.xlane.xlu0 %2309
    %v2311 = vsel %vm2280, %v2241, 0.0
    %2312 = vadd.xlane.f32.xlu0 %v2311
    %v2313 = vpop.xlane.xlu0 %2312
    %v2314 = vsel %vm2280, %v2243, 0.0
    %2315 = vadd.xlane.f32.xlu0 %v2314
    %v2316 = vpop.xlane.xlu0 %2315
    %v2317 = vsel %vm2280, %v2245, 0.0
    %2318 = vadd.xlane.f32.xlu0 %v2317
    %v2319 = vpop.xlane.xlu0 %2318
    %v2320 = vsel %vm2280, %v2247, 0.0
    %2321 = vadd.xlane.f32.xlu0 %v2320
    %v2322 = vpop.xlane.xlu0 %2321
    %v2323 = vsel %vm2280, %v2249, 0.0
    %2324 = vadd.xlane.f32.xlu0 %v2323
    %v2325 = vpop.xlane.xlu0 %2324
    %v2326 = vsel %vm2280, %v2251, 0.0
    %2327 = vadd.xlane.f32.xlu0 %v2326
    %v2328 = vpop.xlane.xlu0 %2327
    %v2329 = vsel %vm2280, %v2253, 0.0
    %2330 = vadd.xlane.f32.xlu0 %v2329
    %v2331 = vpop.xlane.xlu0 %2330
    %v2332 = vsel %vm2280, %v2255, 0.0
    %2333 = vadd.xlane.f32.xlu0 %v2332
    %v2334 = vpop.xlane.xlu0 %2333
    %v2335 = vsel %vm2280, %v2257, 0.0
    %2336 = vadd.xlane.f32.xlu0 %v2335
    %v2337 = vpop.xlane.xlu0 %2336
    %v2338 = vsel %vm2280, %v2259, 0.0
    %2339 = vadd.xlane.f32.xlu0 %v2338
    %v2340 = vpop.xlane.xlu0 %2339
    %v2341 = vmul.f32 %v2283, %v273
    %v2342 = vmul.f32 %v2286, %v274
    %v2343 = vmul.f32 %v2289, %v275
    %v2344 = vmul.f32 %v2292, %v276
    %v2345 = vmul.f32 %v2295, %v277
    %v2346 = vmul.f32 %v2298, %v278
    %v2347 = vmul.f32 %v2301, %v279
    %v2348 = vmul.f32 %v2304, %v280
    %v2349 = vmul.f32 %v2307, %v281
    %v2350 = vmul.f32 %v2310, %v282
    %v2351 = vmul.f32 %v2313, %v283
    %v2352 = vmul.f32 %v2316, %v284
    %v2353 = vmul.f32 %v2319, %v285
    %v2354 = vmul.f32 %v2322, %v286
    %v2355 = vmul.f32 %v2325, %v287
    %v2356 = vmul.f32 %v2328, %v288
    %v2357 = vmul.f32 %v2331, %v289
    %v2358 = vmul.f32 %v2334, %v290
    %v2359 = vmul.f32 %v2337, %v291
    %v2360 = vmul.f32 %v2340, %v292
    %vm2361 = vcmask 113760
    %v2362 = vsel %vm2361, %v2341, 0.0
    %v2363 = vsel %vm2361, %v2342, 0.0
    %v2364 = vadd.f32 %v2362, %v2363
    %v2365 = vsel %vm2361, %v2343, 0.0
    %v2366 = vadd.f32 %v2364, %v2365
    %v2367 = vsel %vm2361, %v2344, 0.0
    %v2368 = vadd.f32 %v2366, %v2367
    %v2369 = vsel %vm2361, %v2345, 0.0
    %v2370 = vadd.f32 %v2368, %v2369
    %v2371 = vsel %vm2361, %v2346, 0.0
    %v2372 = vadd.f32 %v2370, %v2371
    %v2373 = vsel %vm2361, %v2347, 0.0
    %v2374 = vadd.f32 %v2372, %v2373
    %v2375 = vsel %vm2361, %v2348, 0.0
    %v2376 = vadd.f32 %v2374, %v2375
    %v2377 = vsel %vm2361, %v2349, 0.0
    %v2378 = vadd.f32 %v2376, %v2377
    %v2379 = vsel %vm2361, %v2350, 0.0
    %v2380 = vadd.f32 %v2378, %v2379
    %v2381 = vsel %vm2361, %v2351, 0.0
    %v2382 = vadd.f32 %v2380, %v2381
    %v2383 = vsel %vm2361, %v2352, 0.0
    %v2384 = vadd.f32 %v2382, %v2383
    %v2385 = vsel %vm2361, %v2353, 0.0
    %v2386 = vadd.f32 %v2384, %v2385
    %v2387 = vsel %vm2361, %v2354, 0.0
    %v2388 = vadd.f32 %v2386, %v2387
    %v2389 = vsel %vm2361, %v2355, 0.0
    %v2390 = vadd.f32 %v2388, %v2389
    %v2391 = vsel %vm2361, %v2356, 0.0
    %v2392 = vadd.f32 %v2390, %v2391
    %v2393 = vsel %vm2361, %v2357, 0.0
    %v2394 = vadd.f32 %v2392, %v2393
    %v2395 = vsel %vm2361, %v2358, 0.0
    %v2396 = vadd.f32 %v2394, %v2395
    %v2397 = vsel %vm2361, %v2359, 0.0
    %v2398 = vadd.f32 %v2396, %v2397
    %v2399 = vsel %vm2361, %v2360, 0.0
    %v2400 = vadd.f32 %v2398, %v2399
    %v2401 = vrot.slane %v2400, 4
    %v2402 = vadd.f32 %v2400, %v2401
    %v2403 = vrot.slane %v2402, 2
    %v2404 = vadd.f32 %v2402, %v2403
    %v2405 = vrot.slane %v2404, 1
    %v2406 = vadd.f32 %v2404, %v2405
    %2407 = vrot.lane.b32.xlu0 %v398, 12
    %v2408 = vpop.permute.xlu0 %2407
    %v2410 = vadd.f32 %v2406, %v2408
    %2412 = vrot.lane.b32.xlu0 %v2410, 116
    %v2413 = vpop.permute.xlu0 %2412
    %vm2415 = vcmask 8192
    %2416 = vst.msk [vmem:[#allocation2] sm:$0x1] %vm2415, %v2413
    // Predicated region
    $region18: #{tpu_custom_call.1} parent=1 // pred_check
      _
    $region19: #{tpu_custom_call.1} parent=1 // pred_check_branch
      %2418 = sbr.rel (0) target = $region21
    $region20: #{tpu_custom_call.1} parent=1 // pred_region
      %s2420 = ssub.s32 16, 16
      %2421 = vsyncadd [#allocation3], %s2420
      %s2423 = sshll.u32 [#allocation2], 4
      %s2424 = int_to_ptr.vmem [resolvable:$true] %s2423
      %2426 = dma.vmem_to_hbm [thread:$0]  %s2424, 16, %s4, [#allocation3]
    $region21: #{tpu_custom_call.1} parent=1 // pred_fallthru
      _
    // Predicated region
    $region22: #{tpu_custom_call.1} parent=1 // pred_check
      _
    $region23: #{tpu_custom_call.1} parent=1 // pred_check_branch
      %2428 = sbr.rel (0) target = $region25
    $region24: #{tpu_custom_call.1} parent=1 // pred_region
      %2429 = dma.done [#allocation3], 16
    $region25: #{tpu_custom_call.1} parent=1 // pred_fallthru
      _
    %2430 = vsyncpa [#allocation3], 1

</llo_original>
